<compile_context>
chip_gen: v5e
topology: v5e:2x2
jax: 0.10.0
libtpu: 0.0.40
codegen_flags: <defaults>
</compile_context>

<pallas_src>
import functools

import jax
import jax.numpy as jnp
from jax.experimental import pallas as pl
from jax.experimental.pallas import tpu as pltpu

_VMEM = functools.partial(pl.BlockSpec, memory_space=pltpu.MemorySpace.VMEM)


# ----------------------------- fused Pallas kernel -----------------------------

def _gatnet_kernel(x_ref, e_ref, d_ref, dt_ref, s_ref, invdeg_ref, adjb_ref,
                   *refs, n_mlp, gat_cfg):
    # --- unpack packed parameter refs -------------------------------------
    pos = 0
    vert_mlp = [(refs[pos + 2 * i], refs[pos + 2 * i + 1]) for i in range(n_mlp)]
    pos += 2 * n_mlp
    edge_mlp = [(refs[pos + 2 * i], refs[pos + 2 * i + 1]) for i in range(n_mlp)]
    pos += 2 * n_mlp
    gat_params = []
    for _ in gat_cfg:
        gat_params.append(refs[pos:pos + 5])
        pos += 5
    o_ref = refs[pos]         # [Np, out_dim]
    hcat_ref = refs[pos + 1]  # VMEM scratch [Np, max(H*C)] for lane-dense head concat

    def mlp(v, layers):
        for li, (w_ref, b_ref) in enumerate(layers):
            v = jnp.dot(v, w_ref[...], preferred_element_type=jnp.float32) + b_ref[...]
            if li < len(layers) - 1:
                v = jnp.maximum(v, 0.0)
        return v

    # --- encoders ----------------------------------------------------------
    V = mlp(x_ref[...], vert_mlp)        # [Np, gnn_dim]
    Eenc = mlp(e_ref[...], edge_mlp)     # [Ep, gnn_dim]

    D = d_ref[...]             # [Np, Ep]  one-hot by dst (scatter / mean)
    Dt = dt_ref[...]           # [Ep, Np]  = D.T          (gather a_dst per edge)
    S = s_ref[...]             # [Ep, Np]  one-hot by src (gather a_src / scatter)
    inv_deg = invdeg_ref[...]  # [Np, 1]
    adj_bias = adjb_ref[...]   # [Np, Np]  0 on edges (incl. diag/self-loops), -1e30 elsewhere

    # self-loop edge attr (add_self_loops fill='mean'): mean of incoming encoded
    # edge features per dst node.  Layer-independent -> computed once.
    loop_attr = jnp.dot(D, Eenc, preferred_element_type=jnp.float32) * inv_deg  # [Np, gnn]

    np_ = adj_bias.shape[0]
    eye = (jax.lax.broadcasted_iota(jnp.int32, (np_, np_), 0) ==
           jax.lax.broadcasted_iota(jnp.int32, (np_, np_), 1)).astype(jnp.float32)

    # --- GAT layers ----------------------------------------------------------
    for (heads, chan, softplus), (wsrc_ref, wattd_ref, watts_ref, weff_ref,
                                  bias_ref) in zip(gat_cfg, gat_params):
        xp = jnp.dot(V, wsrc_ref[...], preferred_element_type=jnp.float32)        # [Np, H*C]
        a_dst = jnp.dot(xp, wattd_ref[...], preferred_element_type=jnp.float32)   # [Np, H]
        a_src = jnp.dot(xp, watts_ref[...], preferred_element_type=jnp.float32)   # [Np, H]
        ae_e = jnp.dot(Eenc, weff_ref[...], preferred_element_type=jnp.float32)   # [Ep, H]
        ae_loop = jnp.dot(loop_attr, weff_ref[...],
                          preferred_element_type=jnp.float32)                     # [Np, H]

        # per-edge attention logits (node terms gathered via one-hot matmuls)
        f_e = (ae_e
               + jnp.dot(S, a_src, preferred_element_type=jnp.float32)
               + jnp.dot(Dt, a_dst, preferred_element_type=jnp.float32))          # [Ep, H]
        f_loop = ae_loop + a_src + a_dst                                           # [Np, H]
        f_e = jnp.where(f_e >= 0.0, f_e, 0.2 * f_e)          # leaky_relu(0.2)
        f_loop = jnp.where(f_loop >= 0.0, f_loop, 0.2 * f_loop)

        for h in range(heads):
            # scatter edge scores to a dense [Np(dst), Np(src)] tile (VMEM only)
            dense = jnp.dot(D, f_e[:, h:h + 1] * S, preferred_element_type=jnp.float32)
            dense = dense + eye * f_loop[:, h:h + 1]         # self-loop scores on diagonal
            alpha = dense + adj_bias                         # additive -inf mask (post-lrelu)
            m = jnp.max(alpha, axis=1, keepdims=True)
            p = jnp.exp(alpha - m)                           # masked entries underflow to 0
            ssum = jnp.sum(p, axis=1, keepdims=True)
            # ssum >= 1 (self-loop guarantees one unmasked entry); guard anyway.
            # approx=False keeps full f32 parity with the reference at 1e-3 tolerance.
            attn = p * pl.reciprocal(jnp.maximum(ssum, 1e-20), approx=False)
            outh = jnp.dot(attn, xp[:, h * chan:(h + 1) * chan],
                           preferred_element_type=jnp.float32)                     # [Np, C]
            if heads == 1:
                V = outh
            else:
                hcat_ref[:, h * chan:(h + 1) * chan] = outh
        if heads > 1:
            V = hcat_ref[:, :heads * chan]                   # lane-dense head concat
        V = V + bias_ref[...]
        if softplus:
            # numerically-stable softplus (== jax.nn.softplus up to fp rounding)
            V = jnp.maximum(V, 0.0) + jnp.log(1.0 + jnp.exp(-jnp.abs(V)))

    o_ref[...] = V                                           # single full-width store


# ----------------------------- wrapper -----------------------------

def _pad8(n):
    return ((n + 7) // 8) * 8


def _att_block(att):
    """[H, C] attention vectors -> [H*C, H] block matrix (one matmul for all heads)."""
    h, c = att.shape
    return (att[:, :, None] * jnp.eye(h, dtype=att.dtype)[:, None, :]).reshape(h * c, h)


def _fold_edge_att(w_edge, att_edge):
    """Fold W_edge [F, H*C] with att_edge [H, C] into w_eff [F, H]."""
    h, c = att_edge.shape
    return jnp.einsum('fhc,hc->fh', w_edge.reshape(w_edge.shape[0], h, c), att_edge,
                      precision=jax.lax.Precision.HIGHEST)


def gat_net_forward(params, x, edge_index, edge_attr):
    n, e = x.shape[0], edge_attr.shape[0]
    np_, ep = _pad8(n), _pad8(e)
    src, dst = edge_index[0], edge_index[1]

    # index-only graph prep (plain JAX, done once): padded features, one-hot
    # incidence matrices, inverse degree, additive adjacency mask (self-loops on diag).
    x_p = jnp.zeros((np_, x.shape[1]), jnp.float32).at[:n].set(x)
    e_p = jnp.zeros((ep, edge_attr.shape[1]), jnp.float32).at[:e].set(edge_attr)
    eidx = jnp.arange(e)
    D = jnp.zeros((np_, ep), jnp.float32).at[dst, eidx].set(1.0)    # [Np, Ep]
    S = jnp.zeros((ep, np_), jnp.float32).at[eidx, src].set(1.0)    # [Ep, Np]
    Dt = D.T
    deg = jnp.sum(D, axis=1, keepdims=True)
    inv_deg = jnp.where(deg > 0, 1.0 / jnp.maximum(deg, 1.0), 0.0)
    adj = jnp.zeros((np_, np_), jnp.float32).at[dst, src].set(1.0) + jnp.eye(np_)
    adj_bias = jnp.where(adj > 0, 0.0, -1e30).astype(jnp.float32)

    inputs = [x_p, e_p, D, Dt, S, inv_deg, adj_bias]
    for w, b in params['vert_mlp']:
        inputs += [w, b.reshape(1, -1)]
    for w, b in params['edge_mlp']:
        inputs += [w, b.reshape(1, -1)]

    n_gat = len(params['gat'])
    gat_cfg = []
    for li, lp in enumerate(params['gat']):
        heads, chan = lp['att_src'].shape
        gat_cfg.append((heads, chan, li < n_gat - 1))
        inputs += [lp['w_src'],
                   _att_block(lp['att_dst']),
                   _att_block(lp['att_src']),
                   _fold_edge_att(lp['w_edge'], lp['att_edge']),
                   lp['bias'].reshape(1, -1)]

    out_dim = params['gat'][-1]['bias'].shape[0]
    max_width = max(h * c for h, c, _ in gat_cfg)

    out = pl.pallas_call(
        functools.partial(_gatnet_kernel, n_mlp=len(params['vert_mlp']),
                          gat_cfg=tuple(gat_cfg)),
        out_shape=jax.ShapeDtypeStruct((np_, out_dim), jnp.float32),
        in_specs=[_VMEM()] * len(inputs),
        out_specs=_VMEM(),
        scratch_shapes=[pltpu.VMEM((np_, max_width), jnp.float32)],
    )(*inputs)
    # TODO(synk): for large graphs, add a dst-row-tiled grid (BlockSpec (TM, Np) on
    # adj_bias / output, dimension_semantics=("parallel",)) instead of holding the
    # full [Np, Np] attention tile resident in VMEM (required on v7x near N~2300).
    return out[:n]


# ----------------------------- model params -----------------------------

def _glorot(key, shape):
    fan_in = shape[-2] if len(shape) > 1 else shape[-1]
    fan_out = shape[-1]
    lim = (6.0 / (fan_in + fan_out)) ** 0.5
    return jax.random.uniform(key, shape, jnp.float32, -lim, lim)


def init_params(key, vertex_dim, edge_dim, out_dim, cfg):
    # TODO(synk): MLP class not given; assume `mlp_layers` Linear layers with ReLU
    # between them (not after the last), zero_last=False => normal init everywhere.
    def mlp_params(key, d_in, d_out, d_hid, n_layers):
        dims = [d_in] + [d_hid] * (n_layers - 1) + [d_out]
        layers = []
        for i in range(n_layers):
            key, k = jax.random.split(key)
            layers.append((_glorot(k, (dims[i], dims[i + 1])),
                           jnp.zeros((dims[i + 1],), jnp.float32)))
        return key, layers

    gnn_dim, heads = cfg['gnn_dim'], cfg['gnn_heads']
    key, vert_mlp = mlp_params(key, vertex_dim, gnn_dim, cfg['mlp_hid_dim'], cfg['mlp_layers'])
    key, edge_mlp = mlp_params(key, edge_dim, gnn_dim, cfg['mlp_hid_dim'], cfg['mlp_layers'])

    gat_cfgs = [(gnn_dim, gnn_dim, heads)]
    for _ in range(cfg['gnn_layers'] - 2):
        gat_cfgs.append((gnn_dim, gnn_dim, heads))
    gat_cfgs.append((gnn_dim * heads, out_dim, 1))

    gat = []
    for (f_in, f_out, h) in gat_cfgs:
        key, k1, k2, k3, k4, k5 = jax.random.split(key, 6)
        gat.append(dict(
            w_src=_glorot(k1, (f_in, h * f_out)),
            att_src=_glorot(k2, (h, f_out)),
            att_dst=_glorot(k3, (h, f_out)),
            w_edge=_glorot(k4, (gnn_dim, h * f_out)),
            att_edge=_glorot(k5, (h, f_out)),
            bias=jnp.zeros((h * f_out,), jnp.float32),
        ))
    return dict(vert_mlp=vert_mlp, edge_mlp=edge_mlp, gat=gat)


# ----------------------------- pure-JAX reference -----------------------------

def _ref_forward(params, x, edge_index, edge_attr):
    hi = jax.lax.Precision.HIGHEST

    def mlp_ref(layers, x):
        for i, (w, b) in enumerate(layers):
            x = jnp.dot(x, w, precision=hi) + b
            if i < len(layers) - 1:
                x = jnp.maximum(x, 0.0)
        return x

    n = x.shape[0]
    V = mlp_ref(params['vert_mlp'], x)
    E = mlp_ref(params['edge_mlp'], edge_attr)
    src, dst = edge_index[0], edge_index[1]
    deg = jnp.zeros((n,), jnp.float32).at[dst].add(1.0)
    loop = jnp.zeros((n, E.shape[1]), jnp.float32).at[dst].add(E)
    loop = jnp.where(deg[:, None] > 0, loop / jnp.maximum(deg, 1.0)[:, None], 0.0)
    loops = jnp.arange(n, dtype=src.dtype)
    src_a = jnp.concatenate([src, loops])
    dst_a = jnp.concatenate([dst, loops])
    E_a = jnp.concatenate([E, loop], axis=0)

    n_layers = len(params['gat'])
    for li, lp in enumerate(params['gat']):
        H, C = lp['att_src'].shape
        xp = jnp.dot(V, lp['w_src'], precision=hi).reshape(n, H, C)
        ep = jnp.dot(E_a, lp['w_edge'], precision=hi).reshape(-1, H, C)
        a_s = (xp * lp['att_src'][None]).sum(-1)
        a_d = (xp * lp['att_dst'][None]).sum(-1)
        a_e = (ep * lp['att_edge'][None]).sum(-1)
        alpha = a_s[src_a] + a_d[dst_a] + a_e
        alpha = jnp.where(alpha >= 0, alpha, 0.2 * alpha)
        amax = jnp.full((n, H), -jnp.inf).at[dst_a].max(alpha)
        ex = jnp.exp(alpha - amax[dst_a])
        den = jnp.zeros((n, H), jnp.float32).at[dst_a].add(ex)
        att = ex / den[dst_a]
        msg = xp[src_a] * att[..., None]
        out = jnp.zeros((n, H, C), jnp.float32).at[dst_a].add(msg)
        V = out.reshape(n, H * C) + lp['bias']
        if li < n_layers - 1:
            V = jax.nn.softplus(V)
    return V


# ----------------------------- main -----------------------------

if __name__ == "__main__":
    cfg = dict(mlp_layers=2, mlp_hid_dim=32, gnn_layers=2,
               gnn_dim=32, gnn_heads=2, gnn_dropout=0.0)
    vertex_dim, edge_dim, out_dim = 8, 6, 16
    N = 12

    key = jax.random.PRNGKey(0)
    key, kx, ke, kp = jax.random.split(key, 4)

    x = jax.random.normal(kx, (N, vertex_dim), jnp.float32)
    # deterministic loop-free, duplicate-free edge list: (i -> (i+k) % N), k = 1..3
    src = jnp.concatenate([jnp.arange(N, dtype=jnp.int32)] * 3)
    dst = jnp.concatenate([(jnp.arange(N, dtype=jnp.int32) + k) % N for k in (1, 2, 3)])
    edge_index = jnp.stack([src, dst], axis=0)          # [2, 36]
    edge_attr = jax.random.normal(ke, (edge_index.shape[1], edge_dim), jnp.float32)

    params = init_params(kp, vertex_dim, edge_dim, out_dim, cfg)

    out = gat_net_forward(params, x, edge_index, edge_attr)
    out = jax.block_until_ready(out)
    assert out.shape == (N, out_dim), out.shape

    ref = jax.block_until_ready(_ref_forward(params, x, edge_index, edge_attr))
    assert jnp.allclose(out, ref, rtol=1e-3, atol=1e-3), \
        float(jnp.max(jnp.abs(out - ref)))

    print("KERNEL_OK")
</pallas_src>

<mosaic_0001>
module attributes {stable_mosaic.version = 11 : i64} {
  func.func @_gatnet_kernel(%arg0: memref<16x8xf32, #tpu.memory_space<vmem>>, %arg1: memref<40x6xf32, #tpu.memory_space<vmem>>, %arg2: memref<16x40xf32, #tpu.memory_space<vmem>>, %arg3: memref<40x16xf32, #tpu.memory_space<vmem>>, %arg4: memref<40x16xf32, #tpu.memory_space<vmem>>, %arg5: memref<16x1xf32, #tpu.memory_space<vmem>>, %arg6: memref<16x16xf32, #tpu.memory_space<vmem>>, %arg7: memref<8x32xf32, #tpu.memory_space<vmem>>, %arg8: memref<1x32xf32, #tpu.memory_space<vmem>>, %arg9: memref<32x32xf32, #tpu.memory_space<vmem>>, %arg10: memref<1x32xf32, #tpu.memory_space<vmem>>, %arg11: memref<6x32xf32, #tpu.memory_space<vmem>>, %arg12: memref<1x32xf32, #tpu.memory_space<vmem>>, %arg13: memref<32x32xf32, #tpu.memory_space<vmem>>, %arg14: memref<1x32xf32, #tpu.memory_space<vmem>>, %arg15: memref<32x64xf32, #tpu.memory_space<vmem>>, %arg16: memref<64x2xf32, #tpu.memory_space<vmem>>, %arg17: memref<64x2xf32, #tpu.memory_space<vmem>>, %arg18: memref<32x2xf32, #tpu.memory_space<vmem>>, %arg19: memref<1x64xf32, #tpu.memory_space<vmem>>, %arg20: memref<64x16xf32, #tpu.memory_space<vmem>>, %arg21: memref<16x1xf32, #tpu.memory_space<vmem>>, %arg22: memref<16x1xf32, #tpu.memory_space<vmem>>, %arg23: memref<32x1xf32, #tpu.memory_space<vmem>>, %arg24: memref<1x16xf32, #tpu.memory_space<vmem>>, %arg25: memref<16x16xf32, #tpu.memory_space<vmem>>, %arg26: memref<16x64xf32, #tpu.memory_space<vmem>>) attributes {dimension_semantics = [], scalar_prefetch = 0 : i64, scratch_operands = 1 : i64, tpu.core_type = #tpu.core_type<tc>} {
    %c0 = arith.constant 0 : index
    %c0_0 = arith.constant 0 : index
    %0 = vector.load %arg0[%c0, %c0_0] : memref<16x8xf32, #tpu.memory_space<vmem>>, vector<16x8xf32>
    %c0_1 = arith.constant 0 : index
    %c0_2 = arith.constant 0 : index
    %1 = vector.load %arg7[%c0_1, %c0_2] : memref<8x32xf32, #tpu.memory_space<vmem>>, vector<8x32xf32>
    %cst = arith.constant dense<0.000000e+00> : vector<16x32xf32>
    %2 = tpu.matmul %0, %1, %cst {dimension_numbers = #tpu.dot_dimension_numbers<[1], [0], [0], [1], [0, 0, 1, 1], [], []>} : vector<16x8xf32>, vector<8x32xf32>, vector<16x32xf32> -> vector<16x32xf32>
    %c0_3 = arith.constant 0 : index
    %c0_4 = arith.constant 0 : index
    %3 = vector.load %arg8[%c0_3, %c0_4] : memref<1x32xf32, #tpu.memory_space<vmem>>, vector<1x32xf32>
    %4 = vector.broadcast %3 : vector<1x32xf32> to vector<16x32xf32>
    %5 = arith.addf %2, %4 : vector<16x32xf32>
    %cst_5 = arith.constant 0.000000e+00 : f32
    %6 = vector.broadcast %cst_5 : f32 to vector<16x32xf32>
    %7 = arith.maximumf %5, %6 : vector<16x32xf32>
    %c0_6 = arith.constant 0 : index
    %c0_7 = arith.constant 0 : index
    %8 = vector.load %arg9[%c0_6, %c0_7] : memref<32x32xf32, #tpu.memory_space<vmem>>, vector<32x32xf32>
    %cst_8 = arith.constant dense<0.000000e+00> : vector<16x32xf32>
    %9 = tpu.matmul %7, %8, %cst_8 {dimension_numbers = #tpu.dot_dimension_numbers<[1], [0], [0], [1], [0, 0, 1, 1], [], []>} : vector<16x32xf32>, vector<32x32xf32>, vector<16x32xf32> -> vector<16x32xf32>
    %c0_9 = arith.constant 0 : index
    %c0_10 = arith.constant 0 : index
    %10 = vector.load %arg10[%c0_9, %c0_10] : memref<1x32xf32, #tpu.memory_space<vmem>>, vector<1x32xf32>
    %11 = vector.broadcast %10 : vector<1x32xf32> to vector<16x32xf32>
    %12 = arith.addf %9, %11 : vector<16x32xf32>
    %c0_11 = arith.constant 0 : index
    %c0_12 = arith.constant 0 : index
    %13 = vector.load %arg1[%c0_11, %c0_12] : memref<40x6xf32, #tpu.memory_space<vmem>>, vector<40x6xf32>
    %c0_13 = arith.constant 0 : index
    %c0_14 = arith.constant 0 : index
    %14 = vector.load %arg11[%c0_13, %c0_14] : memref<6x32xf32, #tpu.memory_space<vmem>>, vector<6x32xf32>
    %cst_15 = arith.constant dense<0.000000e+00> : vector<40x32xf32>
    %15 = tpu.matmul %13, %14, %cst_15 {dimension_numbers = #tpu.dot_dimension_numbers<[1], [0], [0], [1], [0, 0, 1, 1], [], []>} : vector<40x6xf32>, vector<6x32xf32>, vector<40x32xf32> -> vector<40x32xf32>
    %c0_16 = arith.constant 0 : index
    %c0_17 = arith.constant 0 : index
    %16 = vector.load %arg12[%c0_16, %c0_17] : memref<1x32xf32, #tpu.memory_space<vmem>>, vector<1x32xf32>
    %17 = vector.broadcast %16 : vector<1x32xf32> to vector<40x32xf32>
    %18 = arith.addf %15, %17 : vector<40x32xf32>
    %cst_18 = arith.constant 0.000000e+00 : f32
    %19 = vector.broadcast %cst_18 : f32 to vector<40x32xf32>
    %20 = arith.maximumf %18, %19 : vector<40x32xf32>
    %c0_19 = arith.constant 0 : index
    %c0_20 = arith.constant 0 : index
    %21 = vector.load %arg13[%c0_19, %c0_20] : memref<32x32xf32, #tpu.memory_space<vmem>>, vector<32x32xf32>
    %cst_21 = arith.constant dense<0.000000e+00> : vector<40x32xf32>
    %22 = tpu.matmul %20, %21, %cst_21 {dimension_numbers = #tpu.dot_dimension_numbers<[1], [0], [0], [1], [0, 0, 1, 1], [], []>} : vector<40x32xf32>, vector<32x32xf32>, vector<40x32xf32> -> vector<40x32xf32>
    %c0_22 = arith.constant 0 : index
    %c0_23 = arith.constant 0 : index
    %23 = vector.load %arg14[%c0_22, %c0_23] : memref<1x32xf32, #tpu.memory_space<vmem>>, vector<1x32xf32>
    %24 = vector.broadcast %23 : vector<1x32xf32> to vector<40x32xf32>
    %25 = arith.addf %22, %24 : vector<40x32xf32>
    %c0_24 = arith.constant 0 : index
    %c0_25 = arith.constant 0 : index
    %26 = vector.load %arg2[%c0_24, %c0_25] : memref<16x40xf32, #tpu.memory_space<vmem>>, vector<16x40xf32>
    %c0_26 = arith.constant 0 : index
    %c0_27 = arith.constant 0 : index
    %27 = vector.load %arg3[%c0_26, %c0_27] : memref<40x16xf32, #tpu.memory_space<vmem>>, vector<40x16xf32>
    %c0_28 = arith.constant 0 : index
    %c0_29 = arith.constant 0 : index
    %28 = vector.load %arg4[%c0_28, %c0_29] : memref<40x16xf32, #tpu.memory_space<vmem>>, vector<40x16xf32>
    %c0_30 = arith.constant 0 : index
    %c0_31 = arith.constant 0 : index
    %29 = vector.load %arg5[%c0_30, %c0_31] : memref<16x1xf32, #tpu.memory_space<vmem>>, vector<16x1xf32>
    %c0_32 = arith.constant 0 : index
    %c0_33 = arith.constant 0 : index
    %30 = vector.load %arg6[%c0_32, %c0_33] : memref<16x16xf32, #tpu.memory_space<vmem>>, vector<16x16xf32>
    %cst_34 = arith.constant dense<0.000000e+00> : vector<16x32xf32>
    %31 = tpu.matmul %26, %25, %cst_34 {dimension_numbers = #tpu.dot_dimension_numbers<[1], [0], [0], [1], [0, 0, 1, 1], [], []>} : vector<16x40xf32>, vector<40x32xf32>, vector<16x32xf32> -> vector<16x32xf32>
    %32 = vector.broadcast %29 : vector<16x1xf32> to vector<16x32xf32>
    %33 = arith.mulf %31, %32 : vector<16x32xf32>
    %34 = tpu.iota {dimensions = array<i32: 0>} : vector<16x16xi32>
    %35 = tpu.iota {dimensions = array<i32: 1>} : vector<16x16xi32>
    %36 = arith.cmpi eq, %34, %35 : vector<16x16xi32>
    %37 = arith.extui %36 : vector<16x16xi1> to vector<16x16xi32>
    %38 = arith.sitofp %37 : vector<16x16xi32> to vector<16x16xf32>
    %c0_35 = arith.constant 0 : index
    %c0_36 = arith.constant 0 : index
    %39 = vector.load %arg15[%c0_35, %c0_36] : memref<32x64xf32, #tpu.memory_space<vmem>>, vector<32x64xf32>
    %cst_37 = arith.constant dense<0.000000e+00> : vector<16x64xf32>
    %40 = tpu.matmul %12, %39, %cst_37 {dimension_numbers = #tpu.dot_dimension_numbers<[1], [0], [0], [1], [0, 0, 1, 1], [], []>} : vector<16x32xf32>, vector<32x64xf32>, vector<16x64xf32> -> vector<16x64xf32>
    %c0_38 = arith.constant 0 : index
    %c0_39 = arith.constant 0 : index
    %41 = vector.load %arg16[%c0_38, %c0_39] : memref<64x2xf32, #tpu.memory_space<vmem>>, vector<64x2xf32>
    %cst_40 = arith.constant dense<0.000000e+00> : vector<16x2xf32>
    %42 = tpu.matmul %40, %41, %cst_40 {dimension_numbers = #tpu.dot_dimension_numbers<[1], [0], [0], [1], [0, 0, 1, 1], [], []>} : vector<16x64xf32>, vector<64x2xf32>, vector<16x2xf32> -> vector<16x2xf32>
    %c0_41 = arith.constant 0 : index
    %c0_42 = arith.constant 0 : index
    %43 = vector.load %arg17[%c0_41, %c0_42] : memref<64x2xf32, #tpu.memory_space<vmem>>, vector<64x2xf32>
    %cst_43 = arith.constant dense<0.000000e+00> : vector<16x2xf32>
    %44 = tpu.matmul %40, %43, %cst_43 {dimension_numbers = #tpu.dot_dimension_numbers<[1], [0], [0], [1], [0, 0, 1, 1], [], []>} : vector<16x64xf32>, vector<64x2xf32>, vector<16x2xf32> -> vector<16x2xf32>
    %c0_44 = arith.constant 0 : index
    %c0_45 = arith.constant 0 : index
    %45 = vector.load %arg18[%c0_44, %c0_45] : memref<32x2xf32, #tpu.memory_space<vmem>>, vector<32x2xf32>
    %cst_46 = arith.constant dense<0.000000e+00> : vector<40x2xf32>
    %46 = tpu.matmul %25, %45, %cst_46 {dimension_numbers = #tpu.dot_dimension_numbers<[1], [0], [0], [1], [0, 0, 1, 1], [], []>} : vector<40x32xf32>, vector<32x2xf32>, vector<40x2xf32> -> vector<40x2xf32>
    %c0_47 = arith.constant 0 : index
    %c0_48 = arith.constant 0 : index
    %47 = vector.load %arg18[%c0_47, %c0_48] : memref<32x2xf32, #tpu.memory_space<vmem>>, vector<32x2xf32>
    %cst_49 = arith.constant dense<0.000000e+00> : vector<16x2xf32>
    %48 = tpu.matmul %33, %47, %cst_49 {dimension_numbers = #tpu.dot_dimension_numbers<[1], [0], [0], [1], [0, 0, 1, 1], [], []>} : vector<16x32xf32>, vector<32x2xf32>, vector<16x2xf32> -> vector<16x2xf32>
    %cst_50 = arith.constant dense<0.000000e+00> : vector<40x2xf32>
    %49 = tpu.matmul %28, %44, %cst_50 {dimension_numbers = #tpu.dot_dimension_numbers<[1], [0], [0], [1], [0, 0, 1, 1], [], []>} : vector<40x16xf32>, vector<16x2xf32>, vector<40x2xf32> -> vector<40x2xf32>
    %50 = arith.addf %46, %49 : vector<40x2xf32>
    %cst_51 = arith.constant dense<0.000000e+00> : vector<40x2xf32>
    %51 = tpu.matmul %27, %42, %cst_51 {dimension_numbers = #tpu.dot_dimension_numbers<[1], [0], [0], [1], [0, 0, 1, 1], [], []>} : vector<40x16xf32>, vector<16x2xf32>, vector<40x2xf32> -> vector<40x2xf32>
    %52 = arith.addf %50, %51 : vector<40x2xf32>
    %53 = arith.addf %48, %44 : vector<16x2xf32>
    %54 = arith.addf %53, %42 : vector<16x2xf32>
    %cst_52 = arith.constant 0.000000e+00 : f32
    %55 = vector.broadcast %cst_52 : f32 to vector<40x2xf32>
    %56 = arith.cmpf oge, %52, %55 : vector<40x2xf32>
    %cst_53 = arith.constant 2.000000e-01 : f32
    %57 = vector.broadcast %cst_53 : f32 to vector<40x2xf32>
    %58 = arith.mulf %57, %52 : vector<40x2xf32>
    %59 = arith.select %56, %52, %58 : vector<40x2xi1>, vector<40x2xf32>
    %cst_54 = arith.constant 0.000000e+00 : f32
    %60 = vector.broadcast %cst_54 : f32 to vector<16x2xf32>
    %61 = arith.cmpf oge, %54, %60 : vector<16x2xf32>
    %cst_55 = arith.constant 2.000000e-01 : f32
    %62 = vector.broadcast %cst_55 : f32 to vector<16x2xf32>
    %63 = arith.mulf %62, %54 : vector<16x2xf32>
    %64 = arith.select %61, %54, %63 : vector<16x2xi1>, vector<16x2xf32>
    %65 = vector.extract_strided_slice %59 {offsets = [0, 0], sizes = [40, 1], strides = [1, 1]} : vector<40x2xf32> to vector<40x1xf32>
    %66 = vector.broadcast %65 : vector<40x1xf32> to vector<40x16xf32>
    %67 = arith.mulf %66, %28 : vector<40x16xf32>
    %cst_56 = arith.constant dense<0.000000e+00> : vector<16x16xf32>
    %68 = tpu.matmul %26, %67, %cst_56 {dimension_numbers = #tpu.dot_dimension_numbers<[1], [0], [0], [1], [0, 0, 1, 1], [], []>} : vector<16x40xf32>, vector<40x16xf32>, vector<16x16xf32> -> vector<16x16xf32>
    %69 = vector.extract_strided_slice %64 {offsets = [0, 0], sizes = [16, 1], strides = [1, 1]} : vector<16x2xf32> to vector<16x1xf32>
    %70 = vector.broadcast %69 : vector<16x1xf32> to vector<16x16xf32>
    %71 = arith.mulf %38, %70 : vector<16x16xf32>
    %72 = arith.addf %68, %71 : vector<16x16xf32>
    %73 = arith.addf %72, %30 : vector<16x16xf32>
    %cst_57 = arith.constant dense<0xFF800000> : vector<16xf32>
    %74 = vector.multi_reduction <maximumf>, %73, %cst_57 [1] : vector<16x16xf32> to vector<16xf32>
    %75 = vector.shape_cast %74 : vector<16xf32> to vector<16x1xf32>
    %76 = vector.broadcast %75 : vector<16x1xf32> to vector<16x16xf32>
    %77 = arith.subf %73, %76 : vector<16x16xf32>
    %78 = math.exp %77 : vector<16x16xf32>
    %cst_58 = arith.constant dense<0.000000e+00> : vector<16xf32>
    %79 = vector.multi_reduction <add>, %78, %cst_58 [1] : vector<16x16xf32> to vector<16xf32>
    %80 = vector.shape_cast %79 : vector<16xf32> to vector<16x1xf32>
    %cst_59 = arith.constant 9.99999968E-21 : f32
    %81 = vector.broadcast %cst_59 : f32 to vector<16x1xf32>
    %82 = arith.maximumf %80, %81 : vector<16x1xf32>
    %83 = tpu.reciprocal %82 : vector<16x1xf32> -> vector<16x1xf32>
    %84 = vector.broadcast %83 : vector<16x1xf32> to vector<16x16xf32>
    %85 = arith.mulf %78, %84 : vector<16x16xf32>
    %86 = vector.extract_strided_slice %40 {offsets = [0, 0], sizes = [16, 32], strides = [1, 1]} : vector<16x64xf32> to vector<16x32xf32>
    %cst_60 = arith.constant dense<0.000000e+00> : vector<16x32xf32>
    %87 = tpu.matmul %85, %86, %cst_60 {dimension_numbers = #tpu.dot_dimension_numbers<[1], [0], [0], [1], [0, 0, 1, 1], [], []>} : vector<16x16xf32>, vector<16x32xf32>, vector<16x32xf32> -> vector<16x32xf32>
    %c0_61 = arith.constant 0 : index
    %c0_62 = arith.constant 0 : index
    %88 = vector.load %arg26[%c0_61, %c0_62] : memref<16x64xf32, #tpu.memory_space<vmem>>, vector<16x32xf32>
    tpu.vector_store %arg26[%c0_61, %c0_62], %87 {strides = array<i32>} : memref<16x64xf32, #tpu.memory_space<vmem>>, vector<16x32xf32>,
    %89 = vector.extract_strided_slice %59 {offsets = [0, 1], sizes = [40, 1], strides = [1, 1]} : vector<40x2xf32> to vector<40x1xf32>
    %90 = vector.broadcast %89 : vector<40x1xf32> to vector<40x16xf32>
    %91 = arith.mulf %90, %28 : vector<40x16xf32>
    %cst_63 = arith.constant dense<0.000000e+00> : vector<16x16xf32>
    %92 = tpu.matmul %26, %91, %cst_63 {dimension_numbers = #tpu.dot_dimension_numbers<[1], [0], [0], [1], [0, 0, 1, 1], [], []>} : vector<16x40xf32>, vector<40x16xf32>, vector<16x16xf32> -> vector<16x16xf32>
    %93 = vector.extract_strided_slice %64 {offsets = [0, 1], sizes = [16, 1], strides = [1, 1]} : vector<16x2xf32> to vector<16x1xf32>
    %94 = vector.broadcast %93 : vector<16x1xf32> to vector<16x16xf32>
    %95 = arith.mulf %38, %94 : vector<16x16xf32>
    %96 = arith.addf %92, %95 : vector<16x16xf32>
    %97 = arith.addf %96, %30 : vector<16x16xf32>
    %cst_64 = arith.constant dense<0xFF800000> : vector<16xf32>
    %98 = vector.multi_reduction <maximumf>, %97, %cst_64 [1] : vector<16x16xf32> to vector<16xf32>
    %99 = vector.shape_cast %98 : vector<16xf32> to vector<16x1xf32>
    %100 = vector.broadcast %99 : vector<16x1xf32> to vector<16x16xf32>
    %101 = arith.subf %97, %100 : vector<16x16xf32>
    %102 = math.exp %101 : vector<16x16xf32>
    %cst_65 = arith.constant dense<0.000000e+00> : vector<16xf32>
    %103 = vector.multi_reduction <add>, %102, %cst_65 [1] : vector<16x16xf32> to vector<16xf32>
    %104 = vector.shape_cast %103 : vector<16xf32> to vector<16x1xf32>
    %cst_66 = arith.constant 9.99999968E-21 : f32
    %105 = vector.broadcast %cst_66 : f32 to vector<16x1xf32>
    %106 = arith.maximumf %104, %105 : vector<16x1xf32>
    %107 = tpu.reciprocal %106 : vector<16x1xf32> -> vector<16x1xf32>
    %108 = vector.broadcast %107 : vector<16x1xf32> to vector<16x16xf32>
    %109 = arith.mulf %102, %108 : vector<16x16xf32>
    %110 = vector.extract_strided_slice %40 {offsets = [0, 32], sizes = [16, 32], strides = [1, 1]} : vector<16x64xf32> to vector<16x32xf32>
    %cst_67 = arith.constant dense<0.000000e+00> : vector<16x32xf32>
    %111 = tpu.matmul %109, %110, %cst_67 {dimension_numbers = #tpu.dot_dimension_numbers<[1], [0], [0], [1], [0, 0, 1, 1], [], []>} : vector<16x16xf32>, vector<16x32xf32>, vector<16x32xf32> -> vector<16x32xf32>
    %c0_68 = arith.constant 0 : index
    %c32 = arith.constant 32 : index
    %112 = vector.load %arg26[%c0_68, %c32] : memref<16x64xf32, #tpu.memory_space<vmem>>, vector<16x32xf32>
    tpu.vector_store %arg26[%c0_68, %c32], %111 {strides = array<i32>} : memref<16x64xf32, #tpu.memory_space<vmem>>, vector<16x32xf32>,
    %c0_69 = arith.constant 0 : index
    %c0_70 = arith.constant 0 : index
    %113 = vector.load %arg26[%c0_69, %c0_70] : memref<16x64xf32, #tpu.memory_space<vmem>>, vector<16x64xf32>
    %c0_71 = arith.constant 0 : index
    %c0_72 = arith.constant 0 : index
    %114 = vector.load %arg19[%c0_71, %c0_72] : memref<1x64xf32, #tpu.memory_space<vmem>>, vector<1x64xf32>
    %115 = vector.broadcast %114 : vector<1x64xf32> to vector<16x64xf32>
    %116 = arith.addf %113, %115 : vector<16x64xf32>
    %cst_73 = arith.constant 0.000000e+00 : f32
    %117 = vector.broadcast %cst_73 : f32 to vector<16x64xf32>
    %118 = arith.maximumf %116, %117 : vector<16x64xf32>
    %119 = math.absf %116 : vector<16x64xf32>
    %cst_74 = arith.constant 0.000000e+00 : f32
    %120 = vector.broadcast %cst_74 : f32 to vector<16x64xf32>
    %121 = arith.subf %120, %119 : vector<16x64xf32>
    %122 = math.exp %121 : vector<16x64xf32>
    %cst_75 = arith.constant 1.000000e+00 : f32
    %123 = vector.broadcast %cst_75 : f32 to vector<16x64xf32>
    %124 = arith.addf %123, %122 : vector<16x64xf32>
    %125 = math.log %124 : vector<16x64xf32>
    %126 = arith.addf %118, %125 : vector<16x64xf32>
    %c0_76 = arith.constant 0 : index
    %c0_77 = arith.constant 0 : index
    %127 = vector.load %arg20[%c0_76, %c0_77] : memref<64x16xf32, #tpu.memory_space<vmem>>, vector<64x16xf32>
    %cst_78 = arith.constant dense<0.000000e+00> : vector<16x16xf32>
    %128 = tpu.matmul %126, %127, %cst_78 {dimension_numbers = #tpu.dot_dimension_numbers<[1], [0], [0], [1], [0, 0, 1, 1], [], []>} : vector<16x64xf32>, vector<64x16xf32>, vector<16x16xf32> -> vector<16x16xf32>
    %c0_79 = arith.constant 0 : index
    %c0_80 = arith.constant 0 : index
    %129 = vector.load %arg21[%c0_79, %c0_80] : memref<16x1xf32, #tpu.memory_space<vmem>>, vector<16x1xf32>
    %cst_81 = arith.constant dense<0.000000e+00> : vector<16x1xf32>
    %130 = tpu.matmul %128, %129, %cst_81 {dimension_numbers = #tpu.dot_dimension_numbers<[1], [0], [0], [1], [0, 0, 1, 1], [], []>} : vector<16x16xf32>, vector<16x1xf32>, vector<16x1xf32> -> vector<16x1xf32>
    %c0_82 = arith.constant 0 : index
    %c0_83 = arith.constant 0 : index
    %131 = vector.load %arg22[%c0_82, %c0_83] : memref<16x1xf32, #tpu.memory_space<vmem>>, vector<16x1xf32>
    %cst_84 = arith.constant dense<0.000000e+00> : vector<16x1xf32>
    %132 = tpu.matmul %128, %131, %cst_84 {dimension_numbers = #tpu.dot_dimension_numbers<[1], [0], [0], [1], [0, 0, 1, 1], [], []>} : vector<16x16xf32>, vector<16x1xf32>, vector<16x1xf32> -> vector<16x1xf32>
    %c0_85 = arith.constant 0 : index
    %c0_86 = arith.constant 0 : index
    %133 = vector.load %arg23[%c0_85, %c0_86] : memref<32x1xf32, #tpu.memory_space<vmem>>, vector<32x1xf32>
    %cst_87 = arith.constant dense<0.000000e+00> : vector<40x1xf32>
    %134 = tpu.matmul %25, %133, %cst_87 {dimension_numbers = #tpu.dot_dimension_numbers<[1], [0], [0], [1], [0, 0, 1, 1], [], []>} : vector<40x32xf32>, vector<32x1xf32>, vector<40x1xf32> -> vector<40x1xf32>
    %c0_88 = arith.constant 0 : index
    %c0_89 = arith.constant 0 : index
    %135 = vector.load %arg23[%c0_88, %c0_89] : memref<32x1xf32, #tpu.memory_space<vmem>>, vector<32x1xf32>
    %cst_90 = arith.constant dense<0.000000e+00> : vector<16x1xf32>
    %136 = tpu.matmul %33, %135, %cst_90 {dimension_numbers = #tpu.dot_dimension_numbers<[1], [0], [0], [1], [0, 0, 1, 1], [], []>} : vector<16x32xf32>, vector<32x1xf32>, vector<16x1xf32> -> vector<16x1xf32>
    %cst_91 = arith.constant dense<0.000000e+00> : vector<40x1xf32>
    %137 = tpu.matmul %28, %132, %cst_91 {dimension_numbers = #tpu.dot_dimension_numbers<[1], [0], [0], [1], [0, 0, 1, 1], [], []>} : vector<40x16xf32>, vector<16x1xf32>, vector<40x1xf32> -> vector<40x1xf32>
    %138 = arith.addf %134, %137 : vector<40x1xf32>
    %cst_92 = arith.constant dense<0.000000e+00> : vector<40x1xf32>
    %139 = tpu.matmul %27, %130, %cst_92 {dimension_numbers = #tpu.dot_dimension_numbers<[1], [0], [0], [1], [0, 0, 1, 1], [], []>} : vector<40x16xf32>, vector<16x1xf32>, vector<40x1xf32> -> vector<40x1xf32>
    %140 = arith.addf %138, %139 : vector<40x1xf32>
    %141 = arith.addf %136, %132 : vector<16x1xf32>
    %142 = arith.addf %141, %130 : vector<16x1xf32>
    %cst_93 = arith.constant 0.000000e+00 : f32
    %143 = vector.broadcast %cst_93 : f32 to vector<40x1xf32>
    %144 = arith.cmpf oge, %140, %143 : vector<40x1xf32>
    %cst_94 = arith.constant 2.000000e-01 : f32
    %145 = vector.broadcast %cst_94 : f32 to vector<40x1xf32>
    %146 = arith.mulf %145, %140 : vector<40x1xf32>
    %147 = arith.select %144, %140, %146 : vector<40x1xi1>, vector<40x1xf32>
    %cst_95 = arith.constant 0.000000e+00 : f32
    %148 = vector.broadcast %cst_95 : f32 to vector<16x1xf32>
    %149 = arith.cmpf oge, %142, %148 : vector<16x1xf32>
    %cst_96 = arith.constant 2.000000e-01 : f32
    %150 = vector.broadcast %cst_96 : f32 to vector<16x1xf32>
    %151 = arith.mulf %150, %142 : vector<16x1xf32>
    %152 = arith.select %149, %142, %151 : vector<16x1xi1>, vector<16x1xf32>
    %153 = vector.broadcast %147 : vector<40x1xf32> to vector<40x16xf32>
    %154 = arith.mulf %153, %28 : vector<40x16xf32>
    %cst_97 = arith.constant dense<0.000000e+00> : vector<16x16xf32>
    %155 = tpu.matmul %26, %154, %cst_97 {dimension_numbers = #tpu.dot_dimension_numbers<[1], [0], [0], [1], [0, 0, 1, 1], [], []>} : vector<16x40xf32>, vector<40x16xf32>, vector<16x16xf32> -> vector<16x16xf32>
    %156 = vector.broadcast %152 : vector<16x1xf32> to vector<16x16xf32>
    %157 = arith.mulf %38, %156 : vector<16x16xf32>
    %158 = arith.addf %155, %157 : vector<16x16xf32>
    %159 = arith.addf %158, %30 : vector<16x16xf32>
    %cst_98 = arith.constant dense<0xFF800000> : vector<16xf32>
    %160 = vector.multi_reduction <maximumf>, %159, %cst_98 [1] : vector<16x16xf32> to vector<16xf32>
    %161 = vector.shape_cast %160 : vector<16xf32> to vector<16x1xf32>
    %162 = vector.broadcast %161 : vector<16x1xf32> to vector<16x16xf32>
    %163 = arith.subf %159, %162 : vector<16x16xf32>
    %164 = math.exp %163 : vector<16x16xf32>
    %cst_99 = arith.constant dense<0.000000e+00> : vector<16xf32>
    %165 = vector.multi_reduction <add>, %164, %cst_99 [1] : vector<16x16xf32> to vector<16xf32>
    %166 = vector.shape_cast %165 : vector<16xf32> to vector<16x1xf32>
    %cst_100 = arith.constant 9.99999968E-21 : f32
    %167 = vector.broadcast %cst_100 : f32 to vector<16x1xf32>
    %168 = arith.maximumf %166, %167 : vector<16x1xf32>
    %169 = tpu.reciprocal %168 : vector<16x1xf32> -> vector<16x1xf32>
    %170 = vector.broadcast %169 : vector<16x1xf32> to vector<16x16xf32>
    %171 = arith.mulf %164, %170 : vector<16x16xf32>
    %cst_101 = arith.constant dense<0.000000e+00> : vector<16x16xf32>
    %172 = tpu.matmul %171, %128, %cst_101 {dimension_numbers = #tpu.dot_dimension_numbers<[1], [0], [0], [1], [0, 0, 1, 1], [], []>} : vector<16x16xf32>, vector<16x16xf32>, vector<16x16xf32> -> vector<16x16xf32>
    %c0_102 = arith.constant 0 : index
    %c0_103 = arith.constant 0 : index
    %173 = vector.load %arg24[%c0_102, %c0_103] : memref<1x16xf32, #tpu.memory_space<vmem>>, vector<1x16xf32>
    %174 = vector.broadcast %173 : vector<1x16xf32> to vector<16x16xf32>
    %175 = arith.addf %172, %174 : vector<16x16xf32>
    %c0_104 = arith.constant 0 : index
    %c0_105 = arith.constant 0 : index
    %176 = vector.load %arg25[%c0_104, %c0_105] : memref<16x16xf32, #tpu.memory_space<vmem>>, vector<16x16xf32>
    tpu.vector_store %arg25[%c0_104, %c0_105], %175 {strides = array<i32>} : memref<16x16xf32, #tpu.memory_space<vmem>>, vector<16x16xf32>,
    return
  }
}

</mosaic_0001>

<llo_original>
// kernel: tpu_custom_call.1
$region0: #{tpu_custom_call.1}
  #allocation0 [shape = 'u32[]', space=smem, size = 0x4, offset = 0x4, fixed_abs, tag = 'smem constant byte address 0x4 - core index']
  #allocation1 [shape = 'u32[72,128]{1,0:T(1,128)}', space=vmem, size = 0x9000, scoped, tag = 'internal scratch']
  #allocation2 [shape = 'f32[16,64]{1,0:T(8,128)}', space=vmem, size = 0x2000, scoped, tag = 'scratch operand']
  %s0 = inlined_call_operand.vmem [shape: f32[16,8], index: 0, kind: input, shape index: {}]
  %s1 = inlined_call_operand.vmem [shape: f32[40,6], index: 1, kind: input, shape index: {}]
  %s2 = inlined_call_operand.vmem [shape: f32[16,40], index: 2, kind: input, shape index: {}]
  %s3 = inlined_call_operand.vmem [shape: f32[40,16], index: 3, kind: input, shape index: {}]
  %s4 = inlined_call_operand.vmem [shape: f32[40,16], index: 4, kind: input, shape index: {}]
  %s5 = inlined_call_operand.vmem [shape: f32[16,1], index: 5, kind: input, shape index: {}]
  %s6 = inlined_call_operand.vmem [shape: f32[16,16], index: 6, kind: input, shape index: {}]
  %s7 = inlined_call_operand.vmem [shape: f32[8,32], index: 7, kind: input, shape index: {}]
  %s8 = inlined_call_operand.vmem [shape: f32[1,32], index: 8, kind: input, shape index: {}]
  %s9 = inlined_call_operand.vmem [shape: f32[32,32], index: 9, kind: input, shape index: {}]
  %s10 = inlined_call_operand.vmem [shape: f32[1,32], index: 10, kind: input, shape index: {}]
  %s11 = inlined_call_operand.vmem [shape: f32[6,32], index: 11, kind: input, shape index: {}]
  %s12 = inlined_call_operand.vmem [shape: f32[1,32], index: 12, kind: input, shape index: {}]
  %s13 = inlined_call_operand.vmem [shape: f32[32,32], index: 13, kind: input, shape index: {}]
  %s14 = inlined_call_operand.vmem [shape: f32[1,32], index: 14, kind: input, shape index: {}]
  %s15 = inlined_call_operand.vmem [shape: f32[32,64], index: 15, kind: input, shape index: {}]
  %s16 = inlined_call_operand.vmem [shape: f32[64,2], index: 16, kind: input, shape index: {}]
  %s17 = inlined_call_operand.vmem [shape: f32[64,2], index: 17, kind: input, shape index: {}]
  %s18 = inlined_call_operand.vmem [shape: f32[32,2], index: 18, kind: input, shape index: {}]
  %s19 = inlined_call_operand.vmem [shape: f32[1,64], index: 19, kind: input, shape index: {}]
  %s20 = inlined_call_operand.vmem [shape: f32[64,16], index: 20, kind: input, shape index: {}]
  %s21 = inlined_call_operand.vmem [shape: f32[16,1], index: 21, kind: input, shape index: {}]
  %s22 = inlined_call_operand.vmem [shape: f32[16,1], index: 22, kind: input, shape index: {}]
  %s23 = inlined_call_operand.vmem [shape: f32[32,1], index: 23, kind: input, shape index: {}]
  %s24 = inlined_call_operand.vmem [shape: f32[1,16], index: 24, kind: input, shape index: {}]
  %s25 = inlined_call_operand.hbm [shape: f32[16,16], index: 25, kind: output, shape index: {}]
  %s26 = sld [smem:[#allocation0]]
  $region110: #{tpu_custom_call.1} parent=0
    _
  %s28 = ssub.s32 1, %s26
  %s29 = scalar_select 0, %s28, %s26
  $region1: #{tpu_custom_call.1} parent=0
    #allocation3 [shape = 'u8[8192]{0}', space=vmem, size = 0x2000, scoped, tag = 'output window, operand 0, single buffered']
    #allocation4 [shape = 's32[1]{0}', space=sflag, size = 0x4, scoped, tag = 'scoped memory for tpu_custom_call.1']
    %30 = vsyncpa [#allocation4], 0
    // Predicated region
    $region2: #{tpu_custom_call.1} parent=1 // pred_check
      _
    $region3: #{tpu_custom_call.1} parent=1 // pred_check_branch
      %32 = sbr.rel (0) target = $region5
    $region4: #{tpu_custom_call.1} parent=1 // pred_region
      _
    $region5: #{tpu_custom_call.1} parent=1 // pred_fallthru
      _
    // Predicated region
    $region6: #{tpu_custom_call.1} parent=1 // pred_check
      _
    $region7: #{tpu_custom_call.1} parent=1 // pred_check_branch
      %34 = sbr.rel (0) target = $region9
    $region8: #{tpu_custom_call.1} parent=1 // pred_region
      _
    $region9: #{tpu_custom_call.1} parent=1 // pred_fallthru
      _
    // Predicated region
    $region10: #{tpu_custom_call.1} parent=1 // pred_check
      _
    $region11: #{tpu_custom_call.1} parent=1 // pred_check_branch
      %36 = sbr.rel (0) target = $region13
    $region12: #{tpu_custom_call.1} parent=1 // pred_region
      _
    $region13: #{tpu_custom_call.1} parent=1 // pred_fallthru
      _
    // Predicated region
    $region14: #{tpu_custom_call.1} parent=1 // pred_check
      _
    $region15: #{tpu_custom_call.1} parent=1 // pred_check_branch
      %38 = sbr.rel (0) target = $region17
    $region16: #{tpu_custom_call.1} parent=1 // pred_region
      _
    $region17: #{tpu_custom_call.1} parent=1 // pred_fallthru
      _
    // Predicated region
    $region18: #{tpu_custom_call.1} parent=1 // pred_check
      _
    $region19: #{tpu_custom_call.1} parent=1 // pred_check_branch
      %40 = sbr.rel (0) target = $region21
    $region20: #{tpu_custom_call.1} parent=1 // pred_region
      _
    $region21: #{tpu_custom_call.1} parent=1 // pred_fallthru
      _
    // Predicated region
    $region22: #{tpu_custom_call.1} parent=1 // pred_check
      _
    $region23: #{tpu_custom_call.1} parent=1 // pred_check_branch
      %42 = sbr.rel (0) target = $region25
    $region24: #{tpu_custom_call.1} parent=1 // pred_region
      _
    $region25: #{tpu_custom_call.1} parent=1 // pred_fallthru
      _
    // Predicated region
    $region26: #{tpu_custom_call.1} parent=1 // pred_check
      _
    $region27: #{tpu_custom_call.1} parent=1 // pred_check_branch
      %44 = sbr.rel (0) target = $region29
    $region28: #{tpu_custom_call.1} parent=1 // pred_region
      _
    $region29: #{tpu_custom_call.1} parent=1 // pred_fallthru
      _
    // Predicated region
    $region30: #{tpu_custom_call.1} parent=1 // pred_check
      _
    $region31: #{tpu_custom_call.1} parent=1 // pred_check_branch
      %46 = sbr.rel (0) target = $region33
    $region32: #{tpu_custom_call.1} parent=1 // pred_region
      _
    $region33: #{tpu_custom_call.1} parent=1 // pred_fallthru
      _
    // Predicated region
    $region34: #{tpu_custom_call.1} parent=1 // pred_check
      _
    $region35: #{tpu_custom_call.1} parent=1 // pred_check_branch
      %48 = sbr.rel (0) target = $region37
    $region36: #{tpu_custom_call.1} parent=1 // pred_region
      _
    $region37: #{tpu_custom_call.1} parent=1 // pred_fallthru
      _
    // Predicated region
    $region38: #{tpu_custom_call.1} parent=1 // pred_check
      _
    $region39: #{tpu_custom_call.1} parent=1 // pred_check_branch
      %50 = sbr.rel (0) target = $region41
    $region40: #{tpu_custom_call.1} parent=1 // pred_region
      _
    $region41: #{tpu_custom_call.1} parent=1 // pred_fallthru
      _
    // Predicated region
    $region42: #{tpu_custom_call.1} parent=1 // pred_check
      _
    $region43: #{tpu_custom_call.1} parent=1 // pred_check_branch
      %52 = sbr.rel (0) target = $region45
    $region44: #{tpu_custom_call.1} parent=1 // pred_region
      _
    $region45: #{tpu_custom_call.1} parent=1 // pred_fallthru
      _
    // Predicated region
    $region46: #{tpu_custom_call.1} parent=1 // pred_check
      _
    $region47: #{tpu_custom_call.1} parent=1 // pred_check_branch
      %54 = sbr.rel (0) target = $region49
    $region48: #{tpu_custom_call.1} parent=1 // pred_region
      _
    $region49: #{tpu_custom_call.1} parent=1 // pred_fallthru
      _
    // Predicated region
    $region50: #{tpu_custom_call.1} parent=1 // pred_check
      _
    $region51: #{tpu_custom_call.1} parent=1 // pred_check_branch
      %56 = sbr.rel (0) target = $region53
    $region52: #{tpu_custom_call.1} parent=1 // pred_region
      _
    $region53: #{tpu_custom_call.1} parent=1 // pred_fallthru
      _
    // Predicated region
    $region54: #{tpu_custom_call.1} parent=1 // pred_check
      _
    $region55: #{tpu_custom_call.1} parent=1 // pred_check_branch
      %58 = sbr.rel (0) target = $region57
    $region56: #{tpu_custom_call.1} parent=1 // pred_region
      _
    $region57: #{tpu_custom_call.1} parent=1 // pred_fallthru
      _
    // Predicated region
    $region58: #{tpu_custom_call.1} parent=1 // pred_check
      _
    $region59: #{tpu_custom_call.1} parent=1 // pred_check_branch
      %60 = sbr.rel (0) target = $region61
    $region60: #{tpu_custom_call.1} parent=1 // pred_region
      _
    $region61: #{tpu_custom_call.1} parent=1 // pred_fallthru
      _
    // Predicated region
    $region62: #{tpu_custom_call.1} parent=1 // pred_check
      _
    $region63: #{tpu_custom_call.1} parent=1 // pred_check_branch
      %62 = sbr.rel (0) target = $region65
    $region64: #{tpu_custom_call.1} parent=1 // pred_region
      _
    $region65: #{tpu_custom_call.1} parent=1 // pred_fallthru
      _
    // Predicated region
    $region66: #{tpu_custom_call.1} parent=1 // pred_check
      _
    $region67: #{tpu_custom_call.1} parent=1 // pred_check_branch
      %64 = sbr.rel (0) target = $region69
    $region68: #{tpu_custom_call.1} parent=1 // pred_region
      _
    $region69: #{tpu_custom_call.1} parent=1 // pred_fallthru
      _
    // Predicated region
    $region70: #{tpu_custom_call.1} parent=1 // pred_check
      _
    $region71: #{tpu_custom_call.1} parent=1 // pred_check_branch
      %66 = sbr.rel (0) target = $region73
    $region72: #{tpu_custom_call.1} parent=1 // pred_region
      _
    $region73: #{tpu_custom_call.1} parent=1 // pred_fallthru
      _
    // Predicated region
    $region74: #{tpu_custom_call.1} parent=1 // pred_check
      _
    $region75: #{tpu_custom_call.1} parent=1 // pred_check_branch
      %68 = sbr.rel (0) target = $region77
    $region76: #{tpu_custom_call.1} parent=1 // pred_region
      _
    $region77: #{tpu_custom_call.1} parent=1 // pred_fallthru
      _
    // Predicated region
    $region78: #{tpu_custom_call.1} parent=1 // pred_check
      _
    $region79: #{tpu_custom_call.1} parent=1 // pred_check_branch
      %70 = sbr.rel (0) target = $region81
    $region80: #{tpu_custom_call.1} parent=1 // pred_region
      _
    $region81: #{tpu_custom_call.1} parent=1 // pred_fallthru
      _
    // Predicated region
    $region82: #{tpu_custom_call.1} parent=1 // pred_check
      _
    $region83: #{tpu_custom_call.1} parent=1 // pred_check_branch
      %72 = sbr.rel (0) target = $region85
    $region84: #{tpu_custom_call.1} parent=1 // pred_region
      _
    $region85: #{tpu_custom_call.1} parent=1 // pred_fallthru
      _
    // Predicated region
    $region86: #{tpu_custom_call.1} parent=1 // pred_check
      _
    $region87: #{tpu_custom_call.1} parent=1 // pred_check_branch
      %74 = sbr.rel (0) target = $region89
    $region88: #{tpu_custom_call.1} parent=1 // pred_region
      _
    $region89: #{tpu_custom_call.1} parent=1 // pred_fallthru
      _
    // Predicated region
    $region90: #{tpu_custom_call.1} parent=1 // pred_check
      _
    $region91: #{tpu_custom_call.1} parent=1 // pred_check_branch
      %76 = sbr.rel (0) target = $region93
    $region92: #{tpu_custom_call.1} parent=1 // pred_region
      _
    $region93: #{tpu_custom_call.1} parent=1 // pred_fallthru
      _
    // Predicated region
    $region94: #{tpu_custom_call.1} parent=1 // pred_check
      _
    $region95: #{tpu_custom_call.1} parent=1 // pred_check_branch
      %78 = sbr.rel (0) target = $region97
    $region96: #{tpu_custom_call.1} parent=1 // pred_region
      _
    $region97: #{tpu_custom_call.1} parent=1 // pred_fallthru
      _
    // Predicated region
    $region98: #{tpu_custom_call.1} parent=1 // pred_check
      _
    $region99: #{tpu_custom_call.1} parent=1 // pred_check_branch
      %80 = sbr.rel (0) target = $region101
    $region100: #{tpu_custom_call.1} parent=1 // pred_region
      _
    $region101: #{tpu_custom_call.1} parent=1 // pred_fallthru
      _
    %v81 = vld [vmem:[%s0] sm:$0xff]
    %v82 = vld [vmem:[%s0 + $0x8] sm:$0xff]
    %v83 = vld [vmem:[%s7] sm:$0xff]
    %v84 = vld [vmem:[%s8] sm:$0x1]
    %v86 = vperm.slane %v84, 0
    %vm88 = vcmask 64512
    %v90 = vsel %vm88, %v81, 0
    %v93 = vsel %vm88, %v82, 0
    %95 = vmatpush.msra.mxu0 0.0
    %96 = vmatpush.msra.mxu0 0.0
    %97 = vmatpush.msra.mxu0 0.0
    %98 = vmatpush.msra.mxu0 0.0
    %99 = vmatpush.msra.mxu0 0.0
    %100 = vmatpush.msra.mxu0 0.0
    %101 = vmatpush.msra.mxu0 0.0
    %102 = vmatpush.msra.mxu0 0.0
    %103 = vmatpush.msra.mxu0 0.0
    %104 = vmatpush.msra.mxu0 0.0
    %105 = vmatpush.msra.mxu0 0.0
    %106 = vmatpush.msra.mxu0 0.0
    %107 = vmatpush.msra.mxu0 0.0
    %108 = vmatpush.msra.mxu0 0.0
    %109 = vmatpush.msra.mxu0 0.0
    %110 = vmatpush.msra.mxu0 %v83
    %111 = vmatmul.f32.gmra.mxu0 %v90
    %v112 = vpop.f32.mrf.mxu0
    %v113 = vadd.f32 %v86, %v112
    %114 = vmatmul.f32.gmra.mxu0 %v93
    %v115 = vpop.f32.mrf.mxu0
    %v116 = vadd.f32 %v86, %v115
    %117 = vdwg.mxu0
    %v118 = vmax.f32 %v113, 0.0
    %v119 = vmax.f32 %v116, 0.0
    %v120 = vld [vmem:[%s9] sm:$0xff]
    %v121 = vld [vmem:[%s9 + $0x8] sm:$0xff]
    %v122 = vld [vmem:[%s9 + $0x10] sm:$0xff]
    %v123 = vld [vmem:[%s9 + $0x18] sm:$0xff]
    %v124 = vld [vmem:[%s10] sm:$0x1]
    %v126 = vperm.slane %v124, 0
    %vm128 = vcmask 261120
    %v130 = vsel %vm128, %v118, 0
    %v133 = vsel %vm128, %v119, 0
    %135 = vmatpush.msra.mxu0 0.0
    %136 = vmatpush.msra.mxu0 0.0
    %137 = vmatpush.msra.mxu0 0.0
    %138 = vmatpush.msra.mxu0 0.0
    %139 = vmatpush.msra.mxu0 0.0
    %140 = vmatpush.msra.mxu0 0.0
    %141 = vmatpush.msra.mxu0 0.0
    %142 = vmatpush.msra.mxu0 0.0
    %143 = vmatpush.msra.mxu0 0.0
    %144 = vmatpush.msra.mxu0 0.0
    %145 = vmatpush.msra.mxu0 0.0
    %146 = vmatpush.msra.mxu0 0.0
    %147 = vmatpush.msra.mxu0 %v123
    %148 = vmatpush.msra.mxu0 %v122
    %149 = vmatpush.msra.mxu0 %v121
    %150 = vmatpush.msra.mxu0 %v120
    %151 = vmatmul.f32.gmra.mxu0 %v130
    %v152 = vpop.f32.mrf.mxu0
    %v153 = vadd.f32 %v126, %v152
    %154 = vmatmul.f32.gmra.mxu0 %v133
    %v155 = vpop.f32.mrf.mxu0
    %v156 = vadd.f32 %v126, %v155
    %157 = vdwg.mxu0
    %v158 = vld [vmem:[%s1] sm:$0xff]
    %v159 = vld [vmem:[%s1 + $0x8] sm:$0xff]
    %v160 = vld [vmem:[%s1 + $0x10] sm:$0xff]
    %v161 = vld [vmem:[%s1 + $0x18] sm:$0xff]
    %v162 = vld [vmem:[%s1 + $0x20] sm:$0xff]
    %v163 = vld [vmem:[%s11] sm:$0x3f]
    %v164 = vld [vmem:[%s12] sm:$0x1]
    %v166 = vperm.slane %v164, 0
    %vm168 = vcmask 48128
    %v170 = vsel %vm168, %v158, 0
    %v173 = vsel %vm168, %v159, 0
    %v176 = vsel %vm168, %v160, 0
    %v179 = vsel %vm168, %v161, 0
    %v182 = vsel %vm168, %v162, 0
    %vm184 = vcmask 1045504
    %v186 = vsel %vm184, %v163, 0
    %188 = vmatpush.msra.mxu0 0.0
    %189 = vmatpush.msra.mxu0 0.0
    %190 = vmatpush.msra.mxu0 0.0
    %191 = vmatpush.msra.mxu0 0.0
    %192 = vmatpush.msra.mxu0 0.0
    %193 = vmatpush.msra.mxu0 0.0
    %194 = vmatpush.msra.mxu0 0.0
    %195 = vmatpush.msra.mxu0 0.0
    %196 = vmatpush.msra.mxu0 0.0
    %197 = vmatpush.msra.mxu0 0.0
    %198 = vmatpush.msra.mxu0 0.0
    %199 = vmatpush.msra.mxu0 0.0
    %200 = vmatpush.msra.mxu0 0.0
    %201 = vmatpush.msra.mxu0 0.0
    %202 = vmatpush.msra.mxu0 0.0
    %203 = vmatpush.msra.mxu0 %v186
    %204 = vmatmul.f32.gmra.mxu0 %v170
    %v205 = vpop.f32.mrf.mxu0
    %v206 = vadd.f32 %v166, %v205
    %207 = vmatmul.f32.gmra.mxu0 %v173
    %v208 = vpop.f32.mrf.mxu0
    %v209 = vadd.f32 %v166, %v208
    %210 = vmatmul.f32.gmra.mxu0 %v176
    %v211 = vpop.f32.mrf.mxu0
    %v212 = vadd.f32 %v166, %v211
    %213 = vmatmul.f32.gmra.mxu0 %v179
    %v214 = vpop.f32.mrf.mxu0
    %v215 = vadd.f32 %v166, %v214
    %216 = vmatmul.f32.gmra.mxu0 %v182
    %v217 = vpop.f32.mrf.mxu0
    %v218 = vadd.f32 %v166, %v217
    %219 = vdwg.mxu0
    %v220 = vmax.f32 %v206, 0.0
    %v221 = vmax.f32 %v209, 0.0
    %v222 = vmax.f32 %v212, 0.0
    %v223 = vmax.f32 %v215, 0.0
    %v224 = vmax.f32 %v218, 0.0
    %v225 = vld [vmem:[%s13] sm:$0xff]
    %v226 = vld [vmem:[%s13 + $0x8] sm:$0xff]
    %v227 = vld [vmem:[%s13 + $0x10] sm:$0xff]
    %v228 = vld [vmem:[%s13 + $0x18] sm:$0xff]
    %v229 = vld [vmem:[%s14] sm:$0x1]
    %v231 = vperm.slane %v229, 0
    %v234 = vsel %vm128, %v220, 0
    %v237 = vsel %vm128, %v221, 0
    %v240 = vsel %vm128, %v222, 0
    %v243 = vsel %vm128, %v223, 0
    %v246 = vsel %vm128, %v224, 0
    %248 = vmatpush.msra.mxu0 0.0
    %249 = vmatpush.msra.mxu0 0.0
    %250 = vmatpush.msra.mxu0 0.0
    %251 = vmatpush.msra.mxu0 0.0
    %252 = vmatpush.msra.mxu0 0.0
    %253 = vmatpush.msra.mxu0 0.0
    %254 = vmatpush.msra.mxu0 0.0
    %255 = vmatpush.msra.mxu0 0.0
    %256 = vmatpush.msra.mxu0 0.0
    %257 = vmatpush.msra.mxu0 0.0
    %258 = vmatpush.msra.mxu0 0.0
    %259 = vmatpush.msra.mxu0 0.0
    %260 = vmatpush.msra.mxu0 %v228
    %261 = vmatpush.msra.mxu0 %v227
    %262 = vmatpush.msra.mxu0 %v226
    %263 = vmatpush.msra.mxu0 %v225
    %264 = vmatmul.f32.gmra.mxu0 %v234
    %v265 = vpop.f32.mrf.mxu0
    %v266 = vadd.f32 %v231, %v265
    %267 = vmatmul.f32.gmra.mxu0 %v237
    %v268 = vpop.f32.mrf.mxu0
    %v269 = vadd.f32 %v231, %v268
    %270 = vmatmul.f32.gmra.mxu0 %v240
    %v271 = vpop.f32.mrf.mxu0
    %v272 = vadd.f32 %v231, %v271
    %273 = vmatmul.f32.gmra.mxu0 %v243
    %v274 = vpop.f32.mrf.mxu0
    %v275 = vadd.f32 %v231, %v274
    %276 = vmatmul.f32.gmra.mxu0 %v246
    %v277 = vpop.f32.mrf.mxu0
    %v278 = vadd.f32 %v231, %v277
    %279 = vdwg.mxu0
    %v280 = vld [vmem:[%s2] sm:$0xff]
    %v281 = vld [vmem:[%s2 + $0x8] sm:$0xff]
    %v282 = vld [vmem:[%s3] sm:$0xff]
    %v283 = vld [vmem:[%s3 + $0x8] sm:$0xff]
    %v284 = vld [vmem:[%s3 + $0x10] sm:$0xff]
    %v285 = vld [vmem:[%s3 + $0x18] sm:$0xff]
    %v286 = vld [vmem:[%s3 + $0x20] sm:$0xff]
    %v287 = vld [vmem:[%s4] sm:$0xff]
    %v288 = vld [vmem:[%s4 + $0x8] sm:$0xff]
    %v289 = vld [vmem:[%s4 + $0x10] sm:$0xff]
    %v290 = vld [vmem:[%s4 + $0x18] sm:$0xff]
    %v291 = vld [vmem:[%s4 + $0x20] sm:$0xff]
    %v292 = vld [vmem:[%s5] sm:$0xff]
    %v293 = vld [vmem:[%s5 + $0x8] sm:$0xff]
    %v294 = vld [vmem:[%s6] sm:$0xff]
    %v295 = vld [vmem:[%s6 + $0x8] sm:$0xff]
    %vm296 = vcmask 326656
    %v298 = vsel %vm296, %v280, 0
    %v301 = vsel %vm296, %v281, 0
    %303 = vmatpush.msra.mxu0 0.0
    %304 = vmatpush.msra.mxu0 0.0
    %305 = vmatpush.msra.mxu0 0.0
    %306 = vmatpush.msra.mxu0 0.0
    %307 = vmatpush.msra.mxu0 0.0
    %308 = vmatpush.msra.mxu0 0.0
    %309 = vmatpush.msra.mxu0 0.0
    %310 = vmatpush.msra.mxu0 0.0
    %311 = vmatpush.msra.mxu0 0.0
    %312 = vmatpush.msra.mxu0 0.0
    %313 = vmatpush.msra.mxu0 0.0
    %314 = vmatpush.msra.mxu0 %v278
    %315 = vmatpush.msra.mxu0 %v275
    %316 = vmatpush.msra.mxu0 %v272
    %317 = vmatpush.msra.mxu0 %v269
    %318 = vmatpush.msra.mxu0 %v266
    %319 = vmatmul.f32.gmra.mxu0 %v298
    %v320 = vpop.f32.mrf.mxu0
    %v321 = vadd.f32 0.0, %v320
    %322 = vmatmul.f32.gmra.mxu0 %v301
    %v323 = vpop.f32.mrf.mxu0
    %v324 = vadd.f32 0.0, %v323
    %325 = vdwg.mxu0
    %327 = vset.pattern.permute.xlu0 0
    %328 = vperm.xlu0 %327, %v292
    %v329 = vpop.permute.xlu0 %328
    %332 = vset.pattern.permute.xlu0 0
    %333 = vperm.xlu0 %332, %v293
    %v334 = vpop.permute.xlu0 %333
    %v336 = vmul.f32 %v321, %v329
    %v337 = vmul.f32 %v324, %v334
    %v338 = vlaneseq
    %v339 = vshrl.u32 %v338, 7
    %v340 = vadd.s32 %v339, 8
    %v341 = vlaneseq
    %v342 = vand.u32 %v341, 127
    %vm343 = vcmp.eq.s32.totalorder %v339, %v342
    %vm344 = vcmp.eq.s32.totalorder %v340, %v342
    %v345 = vsel %vm343, 1, 0
    %v346 = vsel %vm344, 1, 0
    %v347 = vcvt.s32.f32 %v345
    %v348 = vcvt.s32.f32 %v346
    %v349 = vld [vmem:[%s15] sm:$0xff]
    %v350 = vld [vmem:[%s15 + $0x8] sm:$0xff]
    %v351 = vld [vmem:[%s15 + $0x10] sm:$0xff]
    %v352 = vld [vmem:[%s15 + $0x18] sm:$0xff]
    %v354 = vsel %vm128, %v153, 0
    %v357 = vsel %vm128, %v156, 0
    %359 = vmatpush.msra.mxu0 0.0
    %360 = vmatpush.msra.mxu0 0.0
    %361 = vmatpush.msra.mxu0 0.0
    %362 = vmatpush.msra.mxu0 0.0
    %363 = vmatpush.msra.mxu0 0.0
    %364 = vmatpush.msra.mxu0 0.0
    %365 = vmatpush.msra.mxu0 0.0
    %366 = vmatpush.msra.mxu0 0.0
    %367 = vmatpush.msra.mxu0 0.0
    %368 = vmatpush.msra.mxu0 0.0
    %369 = vmatpush.msra.mxu0 0.0
    %370 = vmatpush.msra.mxu0 0.0
    %371 = vmatpush.msra.mxu0 %v352
    %372 = vmatpush.msra.mxu0 %v351
    %373 = vmatpush.msra.mxu0 %v350
    %374 = vmatpush.msra.mxu0 %v349
    %375 = vmatmul.f32.gmra.mxu0 %v354
    %v376 = vpop.f32.mrf.mxu0
    %v377 = vadd.f32 0.0, %v376
    %378 = vmatmul.f32.gmra.mxu0 %v357
    %v379 = vpop.f32.mrf.mxu0
    %v380 = vadd.f32 0.0, %v379
    %381 = vdwg.mxu0
    %v382 = vld [vmem:[%s16] sm:$0xff]
    %v383 = vld [vmem:[%s16 + $0x8] sm:$0xff]
    %v384 = vld [vmem:[%s16 + $0x10] sm:$0xff]
    %v385 = vld [vmem:[%s16 + $0x18] sm:$0xff]
    %v386 = vld [vmem:[%s16 + $0x20] sm:$0xff]
    %v387 = vld [vmem:[%s16 + $0x28] sm:$0xff]
    %v388 = vld [vmem:[%s16 + $0x30] sm:$0xff]
    %v389 = vld [vmem:[%s16 + $0x38] sm:$0xff]
    %vm390 = vcmask 523264
    %v392 = vsel %vm390, %v377, 0
    %v395 = vsel %vm390, %v380, 0
    %397 = vmatpush.msra.mxu0 0.0
    %398 = vmatpush.msra.mxu0 0.0
    %399 = vmatpush.msra.mxu0 0.0
    %400 = vmatpush.msra.mxu0 0.0
    %401 = vmatpush.msra.mxu0 0.0
    %402 = vmatpush.msra.mxu0 0.0
    %403 = vmatpush.msra.mxu0 0.0
    %404 = vmatpush.msra.mxu0 0.0
    %405 = vmatpush.msra.mxu0 %v389
    %406 = vmatpush.msra.mxu0 %v388
    %407 = vmatpush.msra.mxu0 %v387
    %408 = vmatpush.msra.mxu0 %v386
    %409 = vmatpush.msra.mxu0 %v385
    %410 = vmatpush.msra.mxu0 %v384
    %411 = vmatpush.msra.mxu0 %v383
    %412 = vmatpush.msra.mxu0 %v382
    %413 = vmatmul.f32.gmra.mxu0 %v392
    %v414 = vpop.f32.mrf.mxu0
    %v415 = vadd.f32 0.0, %v414
    %416 = vmatmul.f32.gmra.mxu0 %v395
    %v417 = vpop.f32.mrf.mxu0
    %v418 = vadd.f32 0.0, %v417
    %419 = vdwg.mxu0
    %v420 = vld [vmem:[%s17] sm:$0xff]
    %v421 = vld [vmem:[%s17 + $0x8] sm:$0xff]
    %v422 = vld [vmem:[%s17 + $0x10] sm:$0xff]
    %v423 = vld [vmem:[%s17 + $0x18] sm:$0xff]
    %v424 = vld [vmem:[%s17 + $0x20] sm:$0xff]
    %v425 = vld [vmem:[%s17 + $0x28] sm:$0xff]
    %v426 = vld [vmem:[%s17 + $0x30] sm:$0xff]
    %v427 = vld [vmem:[%s17 + $0x38] sm:$0xff]
    %428 = vmatpush.msra.mxu0 0.0
    %429 = vmatpush.msra.mxu0 0.0
    %430 = vmatpush.msra.mxu0 0.0
    %431 = vmatpush.msra.mxu0 0.0
    %432 = vmatpush.msra.mxu0 0.0
    %433 = vmatpush.msra.mxu0 0.0
    %434 = vmatpush.msra.mxu0 0.0
    %435 = vmatpush.msra.mxu0 0.0
    %436 = vmatpush.msra.mxu0 %v427
    %437 = vmatpush.msra.mxu0 %v426
    %438 = vmatpush.msra.mxu0 %v425
    %439 = vmatpush.msra.mxu0 %v424
    %440 = vmatpush.msra.mxu0 %v423
    %441 = vmatpush.msra.mxu0 %v422
    %442 = vmatpush.msra.mxu0 %v421
    %443 = vmatpush.msra.mxu0 %v420
    %444 = vmatmul.f32.gmra.mxu0 %v392
    %v445 = vpop.f32.mrf.mxu0
    %v446 = vadd.f32 0.0, %v445
    %447 = vmatmul.f32.gmra.mxu0 %v395
    %v448 = vpop.f32.mrf.mxu0
    %v449 = vadd.f32 0.0, %v448
    %450 = vdwg.mxu0
    %v451 = vld [vmem:[%s18] sm:$0xff]
    %v452 = vld [vmem:[%s18 + $0x8] sm:$0xff]
    %v453 = vld [vmem:[%s18 + $0x10] sm:$0xff]
    %v454 = vld [vmem:[%s18 + $0x18] sm:$0xff]
    %vm455 = vcmask 130048
    %v457 = vsel %vm455, %v287, 0
    %v460 = vsel %vm455, %v288, 0
    %v463 = vsel %vm455, %v289, 0
    %v466 = vsel %vm455, %v290, 0
    %v469 = vsel %vm455, %v291, 0
    %471 = vmatpush.msra.mxu0 0.0
    %472 = vmatpush.msra.mxu0 0.0
    %473 = vmatpush.msra.mxu0 0.0
    %474 = vmatpush.msra.mxu0 0.0
    %475 = vmatpush.msra.mxu0 0.0
    %476 = vmatpush.msra.mxu0 0.0
    %477 = vmatpush.msra.mxu0 0.0
    %478 = vmatpush.msra.mxu0 0.0
    %479 = vmatpush.msra.mxu0 0.0
    %480 = vmatpush.msra.mxu0 0.0
    %481 = vmatpush.msra.mxu0 0.0
    %482 = vmatpush.msra.mxu0 0.0
    %483 = vmatpush.msra.mxu0 0.0
    %484 = vmatpush.msra.mxu0 0.0
    %485 = vmatpush.msra.mxu0 %v449
    %486 = vmatpush.msra.mxu0 %v446
    %487 = vmatmul.f32.gmra.mxu0 %v457
    %v488 = vpop.f32.mrf.mxu0
    %v489 = vadd.f32 0.0, %v488
    %490 = vmatmul.f32.gmra.mxu0 %v460
    %v491 = vpop.f32.mrf.mxu0
    %v492 = vadd.f32 0.0, %v491
    %493 = vmatmul.f32.gmra.mxu0 %v463
    %v494 = vpop.f32.mrf.mxu0
    %v495 = vadd.f32 0.0, %v494
    %496 = vmatmul.f32.gmra.mxu0 %v466
    %v497 = vpop.f32.mrf.mxu0
    %v498 = vadd.f32 0.0, %v497
    %499 = vmatmul.f32.gmra.mxu0 %v469
    %v500 = vpop.f32.mrf.mxu0
    %v501 = vadd.f32 0.0, %v500
    %502 = vdwg.mxu0
    %v504 = vsel %vm128, %v266, 0
    %v507 = vsel %vm128, %v269, 0
    %v510 = vsel %vm128, %v272, 0
    %v513 = vsel %vm128, %v275, 0
    %v516 = vsel %vm128, %v278, 0
    %518 = vmatpush.msra.mxu0 0.0
    %519 = vmatpush.msra.mxu0 0.0
    %520 = vmatpush.msra.mxu0 0.0
    %521 = vmatpush.msra.mxu0 0.0
    %522 = vmatpush.msra.mxu0 0.0
    %523 = vmatpush.msra.mxu0 0.0
    %524 = vmatpush.msra.mxu0 0.0
    %525 = vmatpush.msra.mxu0 0.0
    %526 = vmatpush.msra.mxu0 0.0
    %527 = vmatpush.msra.mxu0 0.0
    %528 = vmatpush.msra.mxu0 0.0
    %529 = vmatpush.msra.mxu0 0.0
    %530 = vmatpush.msra.mxu0 %v454
    %531 = vmatpush.msra.mxu0 %v453
    %532 = vmatpush.msra.mxu0 %v452
    %533 = vmatpush.msra.mxu0 %v451
    %534 = vmatmul.f32.gmra.mxu0 %v504
    %v535 = vpop.f32.mrf.mxu0
    %v536 = vadd.f32 %v489, %v535
    %537 = vmatmul.f32.gmra.mxu0 %v507
    %v538 = vpop.f32.mrf.mxu0
    %v539 = vadd.f32 %v492, %v538
    %540 = vmatmul.f32.gmra.mxu0 %v510
    %v541 = vpop.f32.mrf.mxu0
    %v542 = vadd.f32 %v495, %v541
    %543 = vmatmul.f32.gmra.mxu0 %v513
    %v544 = vpop.f32.mrf.mxu0
    %v545 = vadd.f32 %v498, %v544
    %546 = vmatmul.f32.gmra.mxu0 %v516
    %v547 = vpop.f32.mrf.mxu0
    %v548 = vadd.f32 %v501, %v547
    %549 = vdwg.mxu0
    %v551 = vsel %vm455, %v282, 0
    %v554 = vsel %vm455, %v283, 0
    %v557 = vsel %vm455, %v284, 0
    %v560 = vsel %vm455, %v285, 0
    %v563 = vsel %vm455, %v286, 0
    %565 = vmatpush.msra.mxu0 0.0
    %566 = vmatpush.msra.mxu0 0.0
    %567 = vmatpush.msra.mxu0 0.0
    %568 = vmatpush.msra.mxu0 0.0
    %569 = vmatpush.msra.mxu0 0.0
    %570 = vmatpush.msra.mxu0 0.0
    %571 = vmatpush.msra.mxu0 0.0
    %572 = vmatpush.msra.mxu0 0.0
    %573 = vmatpush.msra.mxu0 0.0
    %574 = vmatpush.msra.mxu0 0.0
    %575 = vmatpush.msra.mxu0 0.0
    %576 = vmatpush.msra.mxu0 0.0
    %577 = vmatpush.msra.mxu0 0.0
    %578 = vmatpush.msra.mxu0 0.0
    %579 = vmatpush.msra.mxu0 %v418
    %580 = vmatpush.msra.mxu0 %v415
    %581 = vmatmul.f32.gmra.mxu0 %v551
    %v582 = vpop.f32.mrf.mxu0
    %v583 = vadd.f32 0.0, %v582
    %584 = vmatmul.f32.gmra.mxu0 %v554
    %v585 = vpop.f32.mrf.mxu0
    %v586 = vadd.f32 0.0, %v585
    %587 = vmatmul.f32.gmra.mxu0 %v557
    %v588 = vpop.f32.mrf.mxu0
    %v589 = vadd.f32 0.0, %v588
    %590 = vmatmul.f32.gmra.mxu0 %v560
    %v591 = vpop.f32.mrf.mxu0
    %v592 = vadd.f32 0.0, %v591
    %593 = vmatmul.f32.gmra.mxu0 %v563
    %v594 = vpop.f32.mrf.mxu0
    %v595 = vadd.f32 0.0, %v594
    %596 = vdwg.mxu0
    %v597 = vadd.f32 %v536, %v583
    %v598 = vadd.f32 %v539, %v586
    %v599 = vadd.f32 %v542, %v589
    %v600 = vadd.f32 %v545, %v592
    %v601 = vadd.f32 %v548, %v595
    %v603 = vsel %vm128, %v336, 0
    %v606 = vsel %vm128, %v337, 0
    %608 = vmatpush.msra.mxu0 0.0
    %609 = vmatpush.msra.mxu0 0.0
    %610 = vmatpush.msra.mxu0 0.0
    %611 = vmatpush.msra.mxu0 0.0
    %612 = vmatpush.msra.mxu0 0.0
    %613 = vmatpush.msra.mxu0 0.0
    %614 = vmatpush.msra.mxu0 0.0
    %615 = vmatpush.msra.mxu0 0.0
    %616 = vmatpush.msra.mxu0 0.0
    %617 = vmatpush.msra.mxu0 0.0
    %618 = vmatpush.msra.mxu0 0.0
    %619 = vmatpush.msra.mxu0 0.0
    %620 = vmatpush.msra.mxu0 %v454
    %621 = vmatpush.msra.mxu0 %v453
    %622 = vmatpush.msra.mxu0 %v452
    %623 = vmatpush.msra.mxu0 %v451
    %624 = vmatmul.f32.gmra.mxu0 %v603
    %v625 = vpop.f32.mrf.mxu0
    %v626 = vadd.f32 %v446, %v625
    %627 = vmatmul.f32.gmra.mxu0 %v606
    %v628 = vpop.f32.mrf.mxu0
    %v629 = vadd.f32 %v449, %v628
    %630 = vdwg.mxu0
    %v631 = vadd.f32 %v626, %v415
    %v632 = vadd.f32 %v629, %v418
    %vm633 = vcmp.ge.f32.partialorder %v597, 0.0
    %vm634 = vcmp.ge.f32.partialorder %v598, 0.0
    %vm635 = vcmp.ge.f32.partialorder %v599, 0.0
    %vm636 = vcmp.ge.f32.partialorder %v600, 0.0
    %vm637 = vcmp.ge.f32.partialorder %v601, 0.0
    %v638 = vmul.f32 %v597, 0.2
    %v639 = vmul.f32 %v598, 0.2
    %v640 = vmul.f32 %v599, 0.2
    %v641 = vmul.f32 %v600, 0.2
    %v642 = vmul.f32 %v601, 0.2
    %v643 = vsel %vm633, %v597, %v638
    %v644 = vsel %vm634, %v598, %v639
    %v645 = vsel %vm635, %v599, %v640
    %v646 = vsel %vm636, %v600, %v641
    %v647 = vsel %vm637, %v601, %v642
    %vm648 = vcmp.ge.f32.partialorder %v631, 0.0
    %vm649 = vcmp.ge.f32.partialorder %v632, 0.0
    %v650 = vmul.f32 %v631, 0.2
    %v651 = vmul.f32 %v632, 0.2
    %v652 = vsel %vm648, %v631, %v650
    %v653 = vsel %vm649, %v632, %v651
    %655 = vset.pattern.permute.xlu0 0
    %656 = vperm.xlu0 %655, %v643
    %v657 = vpop.permute.xlu0 %656
    %660 = vset.pattern.permute.xlu0 0
    %661 = vperm.xlu0 %660, %v644
    %v662 = vpop.permute.xlu0 %661
    %665 = vset.pattern.permute.xlu0 0
    %666 = vperm.xlu0 %665, %v645
    %v667 = vpop.permute.xlu0 %666
    %670 = vset.pattern.permute.xlu0 0
    %671 = vperm.xlu0 %670, %v646
    %v672 = vpop.permute.xlu0 %671
    %675 = vset.pattern.permute.xlu0 0
    %676 = vperm.xlu0 %675, %v647
    %v677 = vpop.permute.xlu0 %676
    %v679 = vmul.f32 %v657, %v287
    %v680 = vmul.f32 %v662, %v288
    %v681 = vmul.f32 %v667, %v289
    %v682 = vmul.f32 %v672, %v290
    %v683 = vmul.f32 %v677, %v291
    %685 = vset.pattern.permute.xlu0 0
    %686 = vperm.xlu0 %685, %v652
    %v687 = vpop.permute.xlu0 %686
    %690 = vset.pattern.permute.xlu0 0
    %691 = vperm.xlu0 %690, %v653
    %v692 = vpop.permute.xlu0 %691
    %v694 = vmul.f32 %v347, %v687
    %v695 = vmul.f32 %v348, %v692
    %696 = vmatpush.msra.mxu0 0.0
    %697 = vmatpush.msra.mxu0 0.0
    %698 = vmatpush.msra.mxu0 0.0
    %699 = vmatpush.msra.mxu0 0.0
    %700 = vmatpush.msra.mxu0 0.0
    %701 = vmatpush.msra.mxu0 0.0
    %702 = vmatpush.msra.mxu0 0.0
    %703 = vmatpush.msra.mxu0 0.0
    %704 = vmatpush.msra.mxu0 0.0
    %705 = vmatpush.msra.mxu0 0.0
    %706 = vmatpush.msra.mxu0 0.0
    %707 = vmatpush.msra.mxu0 %v683
    %708 = vmatpush.msra.mxu0 %v682
    %709 = vmatpush.msra.mxu0 %v681
    %710 = vmatpush.msra.mxu0 %v680
    %711 = vmatpush.msra.mxu0 %v679
    %712 = vmatmul.f32.gmra.mxu0 %v298
    %v713 = vpop.f32.mrf.mxu0
    %v714 = vadd.f32 %v694, %v713
    %715 = vmatmul.f32.gmra.mxu0 %v301
    %v716 = vpop.f32.mrf.mxu0
    %v717 = vadd.f32 %v695, %v716
    %718 = vdwg.mxu0
    %v719 = vadd.f32 %v714, %v294
    %v720 = vadd.f32 %v717, %v295
    %v721 = vsel %vm455, %v719, -inf
    %722 = vmax.xlane.f32.xlu0 %v721
    %v723 = vpop.xlane.xlu0 %722
    %v724 = vsel %vm455, %v720, -inf
    %725 = vmax.xlane.f32.xlu0 %v724
    %v726 = vpop.xlane.xlu0 %725
    %v727 = vsub.f32 %v719, %v723
    %v728 = vsub.f32 %v720, %v726
    %v729 = vmul.f32 %v727, 1.442695
    %v730 = vpow.pop %v729
    %v731 = vmul.f32 %v728, 1.442695
    %v732 = vpow.pop %v731
    %v733 = vsel %vm455, %v730, 0.0
    %734 = vadd.xlane.f32.xlu0 %v733
    %v735 = vpop.xlane.xlu0 %734
    %v736 = vsel %vm455, %v732, 0.0
    %737 = vadd.xlane.f32.xlu0 %v736
    %v738 = vpop.xlane.xlu0 %737
    %v739 = vmax.f32 %v735, 1e-20
    %v740 = vmax.f32 %v738, 1e-20
    %v741 = vrcp.pop %v739
    %v742 = vmul.f32 %v739, %v741
    %v743 = vsub.f32 1.0, %v742
    %v744 = vmul.f32 %v741, %v743
    %v745 = vadd.f32 %v741, %v744
    %vm746 = vweird.f32 %v739
    %vm747 = vweird.f32 %v741
    %vm748 = vmor %vm746, %vm747
    %v749 = vsel %vm748, %v741, %v745
    %v750 = vand.u32 2147483647, %v739
    %vm751 = vcmp.eq.f32.partialorder %v750, 8.507059e+37
    %v752 = vand.u32 %v739, 2147483648
    %v753 = vor.u32 1.1754944e-38, %v752
    %v754 = vsel %vm751, %v753, %v749
    %v755 = vrcp.pop %v740
    %v756 = vmul.f32 %v740, %v755
    %v757 = vsub.f32 1.0, %v756
    %v758 = vmul.f32 %v755, %v757
    %v759 = vadd.f32 %v755, %v758
    %vm760 = vweird.f32 %v740
    %vm761 = vweird.f32 %v755
    %vm762 = vmor %vm760, %vm761
    %v763 = vsel %vm762, %v755, %v759
    %v764 = vand.u32 2147483647, %v740
    %vm765 = vcmp.eq.f32.partialorder %v764, 8.507059e+37
    %v766 = vand.u32 %v740, 2147483648
    %v767 = vor.u32 1.1754944e-38, %v766
    %v768 = vsel %vm765, %v767, %v763
    %v769 = vmul.f32 %v730, %v754
    %v770 = vmul.f32 %v732, %v768
    %v772 = vsel %vm455, %v769, 0
    %v775 = vsel %vm455, %v770, 0
    %777 = vmatpush.msra.mxu0 0.0
    %778 = vmatpush.msra.mxu0 0.0
    %779 = vmatpush.msra.mxu0 0.0
    %780 = vmatpush.msra.mxu0 0.0
    %781 = vmatpush.msra.mxu0 0.0
    %782 = vmatpush.msra.mxu0 0.0
    %783 = vmatpush.msra.mxu0 0.0
    %784 = vmatpush.msra.mxu0 0.0
    %785 = vmatpush.msra.mxu0 0.0
    %786 = vmatpush.msra.mxu0 0.0
    %787 = vmatpush.msra.mxu0 0.0
    %788 = vmatpush.msra.mxu0 0.0
    %789 = vmatpush.msra.mxu0 0.0
    %790 = vmatpush.msra.mxu0 0.0
    %791 = vmatpush.msra.mxu0 %v380
    %792 = vmatpush.msra.mxu0 %v377
    %793 = vmatmul.f32.gmra.mxu0 %v772
    %v794 = vpop.f32.mrf.mxu0
    %v795 = vadd.f32 0.0, %v794
    %796 = vmatmul.f32.gmra.mxu0 %v775
    %v797 = vpop.f32.mrf.mxu0
    %v798 = vadd.f32 0.0, %v797
    %799 = vdwg.mxu0
    %800 = vst.msk [vmem:[#allocation2] sm:$0xff] %vm128, %v795
    %801 = vst.msk [vmem:[#allocation2 + $0x8] sm:$0xff] %vm128, %v798
    %802 = vset.pattern.permute.xlu0 1
    %803 = vperm.xlu0 %802, %v643
    %v804 = vpop.permute.xlu0 %803
    %806 = vset.pattern.permute.xlu0 1
    %807 = vperm.xlu0 %806, %v644
    %v808 = vpop.permute.xlu0 %807
    %810 = vset.pattern.permute.xlu0 1
    %811 = vperm.xlu0 %810, %v645
    %v812 = vpop.permute.xlu0 %811
    %814 = vset.pattern.permute.xlu0 1
    %815 = vperm.xlu0 %814, %v646
    %v816 = vpop.permute.xlu0 %815
    %818 = vset.pattern.permute.xlu0 1
    %819 = vperm.xlu0 %818, %v647
    %v820 = vpop.permute.xlu0 %819
    %v822 = vmul.f32 %v804, %v287
    %v823 = vmul.f32 %v808, %v288
    %v824 = vmul.f32 %v812, %v289
    %v825 = vmul.f32 %v816, %v290
    %v826 = vmul.f32 %v820, %v291
    %827 = vset.pattern.permute.xlu0 1
    %828 = vperm.xlu0 %827, %v652
    %v829 = vpop.permute.xlu0 %828
    %831 = vset.pattern.permute.xlu0 1
    %832 = vperm.xlu0 %831, %v653
    %v833 = vpop.permute.xlu0 %832
    %v835 = vmul.f32 %v347, %v829
    %v836 = vmul.f32 %v348, %v833
    %837 = vmatpush.msra.mxu0 0.0
    %838 = vmatpush.msra.mxu0 0.0
    %839 = vmatpush.msra.mxu0 0.0
    %840 = vmatpush.msra.mxu0 0.0
    %841 = vmatpush.msra.mxu0 0.0
    %842 = vmatpush.msra.mxu0 0.0
    %843 = vmatpush.msra.mxu0 0.0
    %844 = vmatpush.msra.mxu0 0.0
    %845 = vmatpush.msra.mxu0 0.0
    %846 = vmatpush.msra.mxu0 0.0
    %847 = vmatpush.msra.mxu0 0.0
    %848 = vmatpush.msra.mxu0 %v826
    %849 = vmatpush.msra.mxu0 %v825
    %850 = vmatpush.msra.mxu0 %v824
    %851 = vmatpush.msra.mxu0 %v823
    %852 = vmatpush.msra.mxu0 %v822
    %853 = vmatmul.f32.gmra.mxu0 %v298
    %v854 = vpop.f32.mrf.mxu0
    %v855 = vadd.f32 %v835, %v854
    %856 = vmatmul.f32.gmra.mxu0 %v301
    %v857 = vpop.f32.mrf.mxu0
    %v858 = vadd.f32 %v836, %v857
    %859 = vdwg.mxu0
    %v860 = vadd.f32 %v855, %v294
    %v861 = vadd.f32 %v858, %v295
    %v862 = vsel %vm455, %v860, -inf
    %863 = vmax.xlane.f32.xlu0 %v862
    %v864 = vpop.xlane.xlu0 %863
    %v865 = vsel %vm455, %v861, -inf
    %866 = vmax.xlane.f32.xlu0 %v865
    %v867 = vpop.xlane.xlu0 %866
    %v868 = vsub.f32 %v860, %v864
    %v869 = vsub.f32 %v861, %v867
    %v870 = vmul.f32 %v868, 1.442695
    %v871 = vpow.pop %v870
    %v872 = vmul.f32 %v869, 1.442695
    %v873 = vpow.pop %v872
    %v874 = vsel %vm455, %v871, 0.0
    %875 = vadd.xlane.f32.xlu0 %v874
    %v876 = vpop.xlane.xlu0 %875
    %v877 = vsel %vm455, %v873, 0.0
    %878 = vadd.xlane.f32.xlu0 %v877
    %v879 = vpop.xlane.xlu0 %878
    %v880 = vmax.f32 %v876, 1e-20
    %v881 = vmax.f32 %v879, 1e-20
    %v882 = vrcp.pop %v880
    %v883 = vmul.f32 %v880, %v882
    %v884 = vsub.f32 1.0, %v883
    %v885 = vmul.f32 %v882, %v884
    %v886 = vadd.f32 %v882, %v885
    %vm887 = vweird.f32 %v880
    %vm888 = vweird.f32 %v882
    %vm889 = vmor %vm887, %vm888
    %v890 = vsel %vm889, %v882, %v886
    %v891 = vand.u32 2147483647, %v880
    %vm892 = vcmp.eq.f32.partialorder %v891, 8.507059e+37
    %v893 = vand.u32 %v880, 2147483648
    %v894 = vor.u32 1.1754944e-38, %v893
    %v895 = vsel %vm892, %v894, %v890
    %v896 = vrcp.pop %v881
    %v897 = vmul.f32 %v881, %v896
    %v898 = vsub.f32 1.0, %v897
    %v899 = vmul.f32 %v896, %v898
    %v900 = vadd.f32 %v896, %v899
    %vm901 = vweird.f32 %v881
    %vm902 = vweird.f32 %v896
    %vm903 = vmor %vm901, %vm902
    %v904 = vsel %vm903, %v896, %v900
    %v905 = vand.u32 2147483647, %v881
    %vm906 = vcmp.eq.f32.partialorder %v905, 8.507059e+37
    %v907 = vand.u32 %v881, 2147483648
    %v908 = vor.u32 1.1754944e-38, %v907
    %v909 = vsel %vm906, %v908, %v904
    %v910 = vmul.f32 %v871, %v895
    %v911 = vmul.f32 %v873, %v909
    %912 = vrot.lane.b32.xlu0 %v377, 96
    %v913 = vpop.permute.xlu0 %912
    %914 = vrot.lane.b32.xlu0 %v380, 96
    %v915 = vpop.permute.xlu0 %914
    %v919 = vsel %vm455, %v910, 0
    %v922 = vsel %vm455, %v911, 0
    %924 = vmatpush.msra.mxu0 0.0
    %925 = vmatpush.msra.mxu0 0.0
    %926 = vmatpush.msra.mxu0 0.0
    %927 = vmatpush.msra.mxu0 0.0
    %928 = vmatpush.msra.mxu0 0.0
    %929 = vmatpush.msra.mxu0 0.0
    %930 = vmatpush.msra.mxu0 0.0
    %931 = vmatpush.msra.mxu0 0.0
    %932 = vmatpush.msra.mxu0 0.0
    %933 = vmatpush.msra.mxu0 0.0
    %934 = vmatpush.msra.mxu0 0.0
    %935 = vmatpush.msra.mxu0 0.0
    %936 = vmatpush.msra.mxu0 0.0
    %937 = vmatpush.msra.mxu0 0.0
    %938 = vmatpush.msra.mxu0 %v915
    %939 = vmatpush.msra.mxu0 %v913
    %940 = vmatmul.f32.gmra.mxu0 %v919
    %v941 = vpop.f32.mrf.mxu0
    %v942 = vadd.f32 0.0, %v941
    %943 = vmatmul.f32.gmra.mxu0 %v922
    %v944 = vpop.f32.mrf.mxu0
    %v945 = vadd.f32 0.0, %v944
    %946 = vdwg.mxu0
    %949 = vrot.lane.b32.xlu0 %v942, 32
    %v950 = vpop.permute.xlu0 %949
    %951 = vrot.lane.b32.xlu0 %v945, 32
    %v952 = vpop.permute.xlu0 %951
    %vm955 = vcmask 523520
    %956 = vst.msk [vmem:[#allocation2] sm:$0xff] %vm955, %v950
    %957 = vst.msk [vmem:[#allocation2 + $0x8] sm:$0xff] %vm955, %v952
    %v958 = vld [vmem:[#allocation2] sm:$0xff]
    %v959 = vld [vmem:[#allocation2 + $0x8] sm:$0xff]
    %v960 = vld [vmem:[%s19] sm:$0x1]
    %v962 = vperm.slane %v960, 0
    %v964 = vadd.f32 %v958, %v962
    %v965 = vadd.f32 %v959, %v962
    %v966 = vmax.f32 %v964, 0.0
    %v967 = vmax.f32 %v965, 0.0
    %v968 = vand.u32 2147483647, %v964
    %v969 = vand.u32 2147483647, %v965
    %v970 = vsub.f32 0.0, %v968
    %v971 = vsub.f32 0.0, %v969
    %v972 = vmul.f32 %v970, 1.442695
    %v973 = vpow.pop %v972
    %v974 = vmul.f32 %v971, 1.442695
    %v975 = vpow.pop %v974
    %v976 = vadd.f32 %v973, 1.0
    %v977 = vadd.f32 %v975, 1.0
    %v978 = vlog2.pop %v976
    %v979 = vmul.f32 %v978, 0.6931472
    %v980 = vlog2.pop %v977
    %v981 = vmul.f32 %v980, 0.6931472
    %v982 = vadd.f32 %v966, %v979
    %v983 = vadd.f32 %v967, %v981
    %v984 = vld [vmem:[%s20] sm:$0xff]
    %v985 = vld [vmem:[%s20 + $0x8] sm:$0xff]
    %v986 = vld [vmem:[%s20 + $0x10] sm:$0xff]
    %v987 = vld [vmem:[%s20 + $0x18] sm:$0xff]
    %v988 = vld [vmem:[%s20 + $0x20] sm:$0xff]
    %v989 = vld [vmem:[%s20 + $0x28] sm:$0xff]
    %v990 = vld [vmem:[%s20 + $0x30] sm:$0xff]
    %v991 = vld [vmem:[%s20 + $0x38] sm:$0xff]
    %v993 = vsel %vm390, %v982, 0
    %v996 = vsel %vm390, %v983, 0
    %998 = vmatpush.msra.mxu0 0.0
    %999 = vmatpush.msra.mxu0 0.0
    %1000 = vmatpush.msra.mxu0 0.0
    %1001 = vmatpush.msra.mxu0 0.0
    %1002 = vmatpush.msra.mxu0 0.0
    %1003 = vmatpush.msra.mxu0 0.0
    %1004 = vmatpush.msra.mxu0 0.0
    %1005 = vmatpush.msra.mxu0 0.0
    %1006 = vmatpush.msra.mxu0 %v991
    %1007 = vmatpush.msra.mxu0 %v990
    %1008 = vmatpush.msra.mxu0 %v989
    %1009 = vmatpush.msra.mxu0 %v988
    %1010 = vmatpush.msra.mxu0 %v987
    %1011 = vmatpush.msra.mxu0 %v986
    %1012 = vmatpush.msra.mxu0 %v985
    %1013 = vmatpush.msra.mxu0 %v984
    %1014 = vmatmul.f32.gmra.mxu0 %v993
    %v1015 = vpop.f32.mrf.mxu0
    %v1016 = vadd.f32 0.0, %v1015
    %1017 = vmatmul.f32.gmra.mxu0 %v996
    %v1018 = vpop.f32.mrf.mxu0
    %v1019 = vadd.f32 0.0, %v1018
    %1020 = vdwg.mxu0
    %v1021 = vld [vmem:[%s21] sm:$0xff]
    %v1022 = vld [vmem:[%s21 + $0x8] sm:$0xff]
    %v1024 = vsel %vm455, %v1016, 0
    %v1027 = vsel %vm455, %v1019, 0
    %1029 = vmatpush.msra.mxu0 0.0
    %1030 = vmatpush.msra.mxu0 0.0
    %1031 = vmatpush.msra.mxu0 0.0
    %1032 = vmatpush.msra.mxu0 0.0
    %1033 = vmatpush.msra.mxu0 0.0
    %1034 = vmatpush.msra.mxu0 0.0
    %1035 = vmatpush.msra.mxu0 0.0
    %1036 = vmatpush.msra.mxu0 0.0
    %1037 = vmatpush.msra.mxu0 0.0
    %1038 = vmatpush.msra.mxu0 0.0
    %1039 = vmatpush.msra.mxu0 0.0
    %1040 = vmatpush.msra.mxu0 0.0
    %1041 = vmatpush.msra.mxu0 0.0
    %1042 = vmatpush.msra.mxu0 0.0
    %1043 = vmatpush.msra.mxu0 %v1022
    %1044 = vmatpush.msra.mxu0 %v1021
    %1045 = vmatmul.f32.gmra.mxu0 %v1024
    %v1046 = vpop.f32.mrf.mxu0
    %v1047 = vadd.f32 0.0, %v1046
    %1048 = vmatmul.f32.gmra.mxu0 %v1027
    %v1049 = vpop.f32.mrf.mxu0
    %v1050 = vadd.f32 0.0, %v1049
    %1051 = vdwg.mxu0
    %v1052 = vld [vmem:[%s22] sm:$0xff]
    %v1053 = vld [vmem:[%s22 + $0x8] sm:$0xff]
    %1054 = vmatpush.msra.mxu0 0.0
    %1055 = vmatpush.msra.mxu0 0.0
    %1056 = vmatpush.msra.mxu0 0.0
    %1057 = vmatpush.msra.mxu0 0.0
    %1058 = vmatpush.msra.mxu0 0.0
    %1059 = vmatpush.msra.mxu0 0.0
    %1060 = vmatpush.msra.mxu0 0.0
    %1061 = vmatpush.msra.mxu0 0.0
    %1062 = vmatpush.msra.mxu0 0.0
    %1063 = vmatpush.msra.mxu0 0.0
    %1064 = vmatpush.msra.mxu0 0.0
    %1065 = vmatpush.msra.mxu0 0.0
    %1066 = vmatpush.msra.mxu0 0.0
    %1067 = vmatpush.msra.mxu0 0.0
    %1068 = vmatpush.msra.mxu0 %v1053
    %1069 = vmatpush.msra.mxu0 %v1052
    %1070 = vmatmul.f32.gmra.mxu0 %v1024
    %v1071 = vpop.f32.mrf.mxu0
    %v1072 = vadd.f32 0.0, %v1071
    %1073 = vmatmul.f32.gmra.mxu0 %v1027
    %v1074 = vpop.f32.mrf.mxu0
    %v1075 = vadd.f32 0.0, %v1074
    %1076 = vdwg.mxu0
    %v1077 = vld [vmem:[%s23] sm:$0xff]
    %v1078 = vld [vmem:[%s23 + $0x8] sm:$0xff]
    %v1079 = vld [vmem:[%s23 + $0x10] sm:$0xff]
    %v1080 = vld [vmem:[%s23 + $0x18] sm:$0xff]
    %1081 = vmatpush.msra.mxu0 0.0
    %1082 = vmatpush.msra.mxu0 0.0
    %1083 = vmatpush.msra.mxu0 0.0
    %1084 = vmatpush.msra.mxu0 0.0
    %1085 = vmatpush.msra.mxu0 0.0
    %1086 = vmatpush.msra.mxu0 0.0
    %1087 = vmatpush.msra.mxu0 0.0
    %1088 = vmatpush.msra.mxu0 0.0
    %1089 = vmatpush.msra.mxu0 0.0
    %1090 = vmatpush.msra.mxu0 0.0
    %1091 = vmatpush.msra.mxu0 0.0
    %1092 = vmatpush.msra.mxu0 0.0
    %1093 = vmatpush.msra.mxu0 0.0
    %1094 = vmatpush.msra.mxu0 0.0
    %1095 = vmatpush.msra.mxu0 %v1075
    %1096 = vmatpush.msra.mxu0 %v1072
    %1097 = vmatmul.f32.gmra.mxu0 %v457
    %v1098 = vpop.f32.mrf.mxu0
    %v1099 = vadd.f32 0.0, %v1098
    %1100 = vmatmul.f32.gmra.mxu0 %v460
    %v1101 = vpop.f32.mrf.mxu0
    %v1102 = vadd.f32 0.0, %v1101
    %1103 = vmatmul.f32.gmra.mxu0 %v463
    %v1104 = vpop.f32.mrf.mxu0
    %v1105 = vadd.f32 0.0, %v1104
    %1106 = vmatmul.f32.gmra.mxu0 %v466
    %v1107 = vpop.f32.mrf.mxu0
    %v1108 = vadd.f32 0.0, %v1107
    %1109 = vmatmul.f32.gmra.mxu0 %v469
    %v1110 = vpop.f32.mrf.mxu0
    %v1111 = vadd.f32 0.0, %v1110
    %1112 = vdwg.mxu0
    %1113 = vmatpush.msra.mxu0 0.0
    %1114 = vmatpush.msra.mxu0 0.0
    %1115 = vmatpush.msra.mxu0 0.0
    %1116 = vmatpush.msra.mxu0 0.0
    %1117 = vmatpush.msra.mxu0 0.0
    %1118 = vmatpush.msra.mxu0 0.0
    %1119 = vmatpush.msra.mxu0 0.0
    %1120 = vmatpush.msra.mxu0 0.0
    %1121 = vmatpush.msra.mxu0 0.0
    %1122 = vmatpush.msra.mxu0 0.0
    %1123 = vmatpush.msra.mxu0 0.0
    %1124 = vmatpush.msra.mxu0 0.0
    %1125 = vmatpush.msra.mxu0 %v1080
    %1126 = vmatpush.msra.mxu0 %v1079
    %1127 = vmatpush.msra.mxu0 %v1078
    %1128 = vmatpush.msra.mxu0 %v1077
    %1129 = vmatmul.f32.gmra.mxu0 %v504
    %v1130 = vpop.f32.mrf.mxu0
    %v1131 = vadd.f32 %v1099, %v1130
    %1132 = vmatmul.f32.gmra.mxu0 %v507
    %v1133 = vpop.f32.mrf.mxu0
    %v1134 = vadd.f32 %v1102, %v1133
    %1135 = vmatmul.f32.gmra.mxu0 %v510
    %v1136 = vpop.f32.mrf.mxu0
    %v1137 = vadd.f32 %v1105, %v1136
    %1138 = vmatmul.f32.gmra.mxu0 %v513
    %v1139 = vpop.f32.mrf.mxu0
    %v1140 = vadd.f32 %v1108, %v1139
    %1141 = vmatmul.f32.gmra.mxu0 %v516
    %v1142 = vpop.f32.mrf.mxu0
    %v1143 = vadd.f32 %v1111, %v1142
    %1144 = vdwg.mxu0
    %1145 = vmatpush.msra.mxu0 0.0
    %1146 = vmatpush.msra.mxu0 0.0
    %1147 = vmatpush.msra.mxu0 0.0
    %1148 = vmatpush.msra.mxu0 0.0
    %1149 = vmatpush.msra.mxu0 0.0
    %1150 = vmatpush.msra.mxu0 0.0
    %1151 = vmatpush.msra.mxu0 0.0
    %1152 = vmatpush.msra.mxu0 0.0
    %1153 = vmatpush.msra.mxu0 0.0
    %1154 = vmatpush.msra.mxu0 0.0
    %1155 = vmatpush.msra.mxu0 0.0
    %1156 = vmatpush.msra.mxu0 0.0
    %1157 = vmatpush.msra.mxu0 0.0
    %1158 = vmatpush.msra.mxu0 0.0
    %1159 = vmatpush.msra.mxu0 %v1050
    %1160 = vmatpush.msra.mxu0 %v1047
    %1161 = vmatmul.f32.gmra.mxu0 %v551
    %v1162 = vpop.f32.mrf.mxu0
    %v1163 = vadd.f32 0.0, %v1162
    %1164 = vmatmul.f32.gmra.mxu0 %v554
    %v1165 = vpop.f32.mrf.mxu0
    %v1166 = vadd.f32 0.0, %v1165
    %1167 = vmatmul.f32.gmra.mxu0 %v557
    %v1168 = vpop.f32.mrf.mxu0
    %v1169 = vadd.f32 0.0, %v1168
    %1170 = vmatmul.f32.gmra.mxu0 %v560
    %v1171 = vpop.f32.mrf.mxu0
    %v1172 = vadd.f32 0.0, %v1171
    %1173 = vmatmul.f32.gmra.mxu0 %v563
    %v1174 = vpop.f32.mrf.mxu0
    %v1175 = vadd.f32 0.0, %v1174
    %1176 = vdwg.mxu0
    %v1177 = vadd.f32 %v1131, %v1163
    %v1178 = vadd.f32 %v1134, %v1166
    %v1179 = vadd.f32 %v1137, %v1169
    %v1180 = vadd.f32 %v1140, %v1172
    %v1181 = vadd.f32 %v1143, %v1175
    %1182 = vmatpush.msra.mxu0 0.0
    %1183 = vmatpush.msra.mxu0 0.0
    %1184 = vmatpush.msra.mxu0 0.0
    %1185 = vmatpush.msra.mxu0 0.0
    %1186 = vmatpush.msra.mxu0 0.0
    %1187 = vmatpush.msra.mxu0 0.0
    %1188 = vmatpush.msra.mxu0 0.0
    %1189 = vmatpush.msra.mxu0 0.0
    %1190 = vmatpush.msra.mxu0 0.0
    %1191 = vmatpush.msra.mxu0 0.0
    %1192 = vmatpush.msra.mxu0 0.0
    %1193 = vmatpush.msra.mxu0 0.0
    %1194 = vmatpush.msra.mxu0 %v1080
    %1195 = vmatpush.msra.mxu0 %v1079
    %1196 = vmatpush.msra.mxu0 %v1078
    %1197 = vmatpush.msra.mxu0 %v1077
    %1198 = vmatmul.f32.gmra.mxu0 %v603
    %v1199 = vpop.f32.mrf.mxu0
    %v1200 = vadd.f32 %v1072, %v1199
    %1201 = vmatmul.f32.gmra.mxu0 %v606
    %v1202 = vpop.f32.mrf.mxu0
    %v1203 = vadd.f32 %v1075, %v1202
    %1204 = vdwg.mxu0
    %v1205 = vadd.f32 %v1200, %v1047
    %v1206 = vadd.f32 %v1203, %v1050
    %vm1207 = vcmp.ge.f32.partialorder %v1177, 0.0
    %vm1208 = vcmp.ge.f32.partialorder %v1178, 0.0
    %vm1209 = vcmp.ge.f32.partialorder %v1179, 0.0
    %vm1210 = vcmp.ge.f32.partialorder %v1180, 0.0
    %vm1211 = vcmp.ge.f32.partialorder %v1181, 0.0
    %v1212 = vmul.f32 %v1177, 0.2
    %v1213 = vmul.f32 %v1178, 0.2
    %v1214 = vmul.f32 %v1179, 0.2
    %v1215 = vmul.f32 %v1180, 0.2
    %v1216 = vmul.f32 %v1181, 0.2
    %v1217 = vsel %vm1207, %v1177, %v1212
    %v1218 = vsel %vm1208, %v1178, %v1213
    %v1219 = vsel %vm1209, %v1179, %v1214
    %v1220 = vsel %vm1210, %v1180, %v1215
    %v1221 = vsel %vm1211, %v1181, %v1216
    %vm1222 = vcmp.ge.f32.partialorder %v1205, 0.0
    %vm1223 = vcmp.ge.f32.partialorder %v1206, 0.0
    %v1224 = vmul.f32 %v1205, 0.2
    %v1225 = vmul.f32 %v1206, 0.2
    %v1226 = vsel %vm1222, %v1205, %v1224
    %v1227 = vsel %vm1223, %v1206, %v1225
    %1229 = vset.pattern.permute.xlu0 0
    %1230 = vperm.xlu0 %1229, %v1217
    %v1231 = vpop.permute.xlu0 %1230
    %1234 = vset.pattern.permute.xlu0 0
    %1235 = vperm.xlu0 %1234, %v1218
    %v1236 = vpop.permute.xlu0 %1235
    %1239 = vset.pattern.permute.xlu0 0
    %1240 = vperm.xlu0 %1239, %v1219
    %v1241 = vpop.permute.xlu0 %1240
    %1244 = vset.pattern.permute.xlu0 0
    %1245 = vperm.xlu0 %1244, %v1220
    %v1246 = vpop.permute.xlu0 %1245
    %1249 = vset.pattern.permute.xlu0 0
    %1250 = vperm.xlu0 %1249, %v1221
    %v1251 = vpop.permute.xlu0 %1250
    %v1253 = vmul.f32 %v1231, %v287
    %v1254 = vmul.f32 %v1236, %v288
    %v1255 = vmul.f32 %v1241, %v289
    %v1256 = vmul.f32 %v1246, %v290
    %v1257 = vmul.f32 %v1251, %v291
    %1259 = vset.pattern.permute.xlu0 0
    %1260 = vperm.xlu0 %1259, %v1226
    %v1261 = vpop.permute.xlu0 %1260
    %1264 = vset.pattern.permute.xlu0 0
    %1265 = vperm.xlu0 %1264, %v1227
    %v1266 = vpop.permute.xlu0 %1265
    %v1268 = vmul.f32 %v347, %v1261
    %v1269 = vmul.f32 %v348, %v1266
    %1270 = vmatpush.msra.mxu0 0.0
    %1271 = vmatpush.msra.mxu0 0.0
    %1272 = vmatpush.msra.mxu0 0.0
    %1273 = vmatpush.msra.mxu0 0.0
    %1274 = vmatpush.msra.mxu0 0.0
    %1275 = vmatpush.msra.mxu0 0.0
    %1276 = vmatpush.msra.mxu0 0.0
    %1277 = vmatpush.msra.mxu0 0.0
    %1278 = vmatpush.msra.mxu0 0.0
    %1279 = vmatpush.msra.mxu0 0.0
    %1280 = vmatpush.msra.mxu0 0.0
    %1281 = vmatpush.msra.mxu0 %v1257
    %1282 = vmatpush.msra.mxu0 %v1256
    %1283 = vmatpush.msra.mxu0 %v1255
    %1284 = vmatpush.msra.mxu0 %v1254
    %1285 = vmatpush.msra.mxu0 %v1253
    %1286 = vmatmul.f32.gmra.mxu0 %v298
    %v1287 = vpop.f32.mrf.mxu0
    %v1288 = vadd.f32 %v1268, %v1287
    %1289 = vmatmul.f32.gmra.mxu0 %v301
    %v1290 = vpop.f32.mrf.mxu0
    %v1291 = vadd.f32 %v1269, %v1290
    %1292 = vdwg.mxu0
    %v1293 = vadd.f32 %v1288, %v294
    %v1294 = vadd.f32 %v1291, %v295
    %v1295 = vsel %vm455, %v1293, -inf
    %1296 = vmax.xlane.f32.xlu0 %v1295
    %v1297 = vpop.xlane.xlu0 %1296
    %v1298 = vsel %vm455, %v1294, -inf
    %1299 = vmax.xlane.f32.xlu0 %v1298
    %v1300 = vpop.xlane.xlu0 %1299
    %v1301 = vsub.f32 %v1293, %v1297
    %v1302 = vsub.f32 %v1294, %v1300
    %v1303 = vmul.f32 %v1301, 1.442695
    %v1304 = vpow.pop %v1303
    %v1305 = vmul.f32 %v1302, 1.442695
    %v1306 = vpow.pop %v1305
    %v1307 = vsel %vm455, %v1304, 0.0
    %1308 = vadd.xlane.f32.xlu0 %v1307
    %v1309 = vpop.xlane.xlu0 %1308
    %v1310 = vsel %vm455, %v1306, 0.0
    %1311 = vadd.xlane.f32.xlu0 %v1310
    %v1312 = vpop.xlane.xlu0 %1311
    %v1313 = vmax.f32 %v1309, 1e-20
    %v1314 = vmax.f32 %v1312, 1e-20
    %v1315 = vrcp.pop %v1313
    %v1316 = vmul.f32 %v1313, %v1315
    %v1317 = vsub.f32 1.0, %v1316
    %v1318 = vmul.f32 %v1315, %v1317
    %v1319 = vadd.f32 %v1315, %v1318
    %vm1320 = vweird.f32 %v1313
    %vm1321 = vweird.f32 %v1315
    %vm1322 = vmor %vm1320, %vm1321
    %v1323 = vsel %vm1322, %v1315, %v1319
    %v1324 = vand.u32 2147483647, %v1313
    %vm1325 = vcmp.eq.f32.partialorder %v1324, 8.507059e+37
    %v1326 = vand.u32 %v1313, 2147483648
    %v1327 = vor.u32 1.1754944e-38, %v1326
    %v1328 = vsel %vm1325, %v1327, %v1323
    %v1329 = vrcp.pop %v1314
    %v1330 = vmul.f32 %v1314, %v1329
    %v1331 = vsub.f32 1.0, %v1330
    %v1332 = vmul.f32 %v1329, %v1331
    %v1333 = vadd.f32 %v1329, %v1332
    %vm1334 = vweird.f32 %v1314
    %vm1335 = vweird.f32 %v1329
    %vm1336 = vmor %vm1334, %vm1335
    %v1337 = vsel %vm1336, %v1329, %v1333
    %v1338 = vand.u32 2147483647, %v1314
    %vm1339 = vcmp.eq.f32.partialorder %v1338, 8.507059e+37
    %v1340 = vand.u32 %v1314, 2147483648
    %v1341 = vor.u32 1.1754944e-38, %v1340
    %v1342 = vsel %vm1339, %v1341, %v1337
    %v1343 = vmul.f32 %v1304, %v1328
    %v1344 = vmul.f32 %v1306, %v1342
    %v1345 = vld [vmem:[%s24] sm:$0x1]
    %v1347 = vperm.slane %v1345, 0
    %v1350 = vsel %vm455, %v1343, 0
    %v1353 = vsel %vm455, %v1344, 0
    %1355 = vmatpush.msra.mxu0 0.0
    %1356 = vmatpush.msra.mxu0 0.0
    %1357 = vmatpush.msra.mxu0 0.0
    %1358 = vmatpush.msra.mxu0 0.0
    %1359 = vmatpush.msra.mxu0 0.0
    %1360 = vmatpush.msra.mxu0 0.0
    %1361 = vmatpush.msra.mxu0 0.0
    %1362 = vmatpush.msra.mxu0 0.0
    %1363 = vmatpush.msra.mxu0 0.0
    %1364 = vmatpush.msra.mxu0 0.0
    %1365 = vmatpush.msra.mxu0 0.0
    %1366 = vmatpush.msra.mxu0 0.0
    %1367 = vmatpush.msra.mxu0 0.0
    %1368 = vmatpush.msra.mxu0 0.0
    %1369 = vmatpush.msra.mxu0 %v1019
    %1370 = vmatpush.msra.mxu0 %v1016
    %1371 = vmatmul.f32.gmra.mxu0 %v1350
    %v1372 = vpop.f32.mrf.mxu0
    %v1373 = vadd.f32 %v1347, %v1372
    %1374 = vmatmul.f32.gmra.mxu0 %v1353
    %v1375 = vpop.f32.mrf.mxu0
    %v1376 = vadd.f32 %v1347, %v1375
    %1377 = vdwg.mxu0
    %1378 = vst.msk [vmem:[#allocation3] sm:$0xff] %vm455, %v1373
    %1379 = vst.msk [vmem:[#allocation3 + $0x8] sm:$0xff] %vm455, %v1376
    // Predicated region
    $region102: #{tpu_custom_call.1} parent=1 // pred_check
      _
    $region103: #{tpu_custom_call.1} parent=1 // pred_check_branch
      %1381 = sbr.rel (0) target = $region105
    $region104: #{tpu_custom_call.1} parent=1 // pred_region
      %1383 = vsyncadd [#allocation4], 0
      %s1384 = sshll.u32 [#allocation3], 4
      %s1385 = int_to_ptr.vmem [resolvable:$true] %s1384
      %s1386 = sshll.u32 %s25, 4
      %s1387 = int_to_ptr.hbm [resolvable:$true] %s1386
      %1392 = dma.vmem_to_hbm [thread:$0]  %s1385, 256, %s1387, [#allocation4], 128, 128, 8
    $region105: #{tpu_custom_call.1} parent=1 // pred_fallthru
      _
    // Predicated region
    $region106: #{tpu_custom_call.1} parent=1 // pred_check
      _
    $region107: #{tpu_custom_call.1} parent=1 // pred_check_branch
      %1394 = sbr.rel (0) target = $region109
    $region108: #{tpu_custom_call.1} parent=1 // pred_region
      %1396 = dma.done [#allocation4], 256
    $region109: #{tpu_custom_call.1} parent=1 // pred_fallthru
      _
    %1397 = vsyncpa [#allocation4], 1

</llo_original>
